<compile_context>
chip_gen: v7x
topology: tpu7x:2x2x1
jax: 0.10.0
libtpu: 0.0.40
codegen_flags: <defaults>
</compile_context>

<pallas_src>
import functools

import jax
import jax.numpy as jnp
from jax import lax
from jax.experimental import pallas as pl
from jax.experimental.pallas import tpu as pltpu


def _round_up(x, m):
    return (x + m - 1) // m * m


def _vmem_capacity_bytes(default=64 * 1024 * 1024):
    """Per-TensorCore VMEM capacity; falls back to the smallest (v7x) value."""
    try:
        return int(pltpu.get_tpu_info().vmem_capacity_bytes)
    except Exception:
        return default


def _ffn_kernel(x_ref, w1_ref, b1_ref, w2_ref, b2_ref, o_ref, acc_ref,
                *, precision):
    # Per grid step (i over rows, f over d_ff chunks, f innermost):
    #   x_ref  (tm, d_model)    w1_ref (tf, d_model)    b1_ref (1, tf)
    #   w2_ref (d_model, tf)    b2_ref (1, d_model)
    #   o_ref  (tm, d_model)    acc_ref (tm, d_model) fp32 scratch
    f = pl.program_id(1)

    @pl.when(f == 0)
    def _init():
        acc_ref[...] = jnp.zeros_like(acc_ref)

    x = x_ref[...]

    # (tm, d_model) . (tf, d_model) contracting the last axis of BOTH operands
    # (rhs-transposed matmul -> native MXU path, no per-step XLU transpose).
    h = lax.dot_general(
        x, w1_ref[...],
        dimension_numbers=(((1,), (1,)), ((), ())),
        preferred_element_type=jnp.float32,
        precision=precision,
    )
    h = jnp.maximum(h + b1_ref[...], 0.0)          # bias + ReLU in fp32
    # TODO(synk): dropout is identity here (inference); training-mode dropout
    # would draw a mask with pltpu.prng_seed / pltpu.prng_random_bits on this
    # (tm, tf) tile instead of streaming a mask from HBM.

    # (tm, tf) . (d_model, tf) contracting last axes -> (tm, d_model), fp32 acc.
    acc_ref[...] += lax.dot_general(
        h.astype(x.dtype), w2_ref[...],
        dimension_numbers=(((1,), (1,)), ((), ())),
        preferred_element_type=jnp.float32,
        precision=precision,
    )

    @pl.when(f == pl.num_programs(1) - 1)
    def _finalize():
        o_ref[...] = (acc_ref[...] + b2_ref[...]).astype(o_ref.dtype)


def positionwise_feed_forward(x, w1, b1, w2, b2, *, tile_m=512, tile_f=2048,
                              use_bf16_matmul=False,
                              precision=lax.Precision.HIGHEST):
    """x: (batch, seq, d_model) -> (batch, seq, d_model).

    Weights follow the PyTorch nn.Linear convention:
      w1: (d_ff, d_model), b1: (d_ff,), w2: (d_model, d_ff), b2: (d_model,)
    """
    batch, seq, d_model = x.shape
    d_ff = w1.shape[0]
    M = batch * seq
    out_dtype = x.dtype

    x2d = x.reshape(M, d_model)
    if use_bf16_matmul and x2d.dtype == jnp.float32:
        # Feed the MXU its native bf16; accumulation stays fp32 in-kernel.
        x2d = x2d.astype(jnp.bfloat16)
        w1 = w1.astype(jnp.bfloat16)
        w2 = w2.astype(jnp.bfloat16)
        precision = None
    b1_2d = b1.reshape(1, d_ff)
    b2_2d = b2.reshape(1, d_model)

    xsize = jnp.dtype(x2d.dtype).itemsize
    wsize = jnp.dtype(w1.dtype).itemsize
    bsize = jnp.dtype(b1.dtype).itemsize
    osize = jnp.dtype(out_dtype).itemsize
    sub = 16 if xsize == 2 else 8                  # sublane granularity

    cap = _vmem_capacity_bytes()
    budget = max(cap - (8 << 20), 16 << 20)        # headroom for Mosaic scratch

    # ---- M tiling ---------------------------------------------------------
    tm = min(tile_m, _round_up(M, sub))
    tm = max(_round_up(tm, sub), sub)
    # Megacore guard (v7x: 2 TCs): give the "parallel" axis >= 2 steps when
    # there is enough work to split.
    if pl.cdiv(M, tm) == 1 and M >= 2 * sub:
        tm = _round_up(pl.cdiv(M, 2), sub)

    # ---- d_ff tiling (weight streaming) -------------------------------------
    def _step_bytes(tm_, tf_, nbuf_w):
        return (nbuf_w * 2 * tf_ * d_model * wsize        # w1 + w2 tiles
                + nbuf_w * tf_ * bsize + d_model * bsize  # b1 tile(s) + b2
                + 2 * tm_ * d_model * (xsize + osize)     # x / out double-buffers
                + tm_ * d_model * 4                       # fp32 accumulator
                + tm_ * tf_ * (4 + xsize))                # fp32 hidden + cast copy

    if _step_bytes(tm, d_ff, 1) <= 0.7 * budget:
        tf = d_ff                                         # weights fully resident
    else:
        # Largest divisor of d_ff that is a multiple of 128 and <= tile_f
        # (exact divisibility required for accumulation correctness).
        tf = 0
        cand = min(max(tile_f - tile_f % 128, 128), d_ff - d_ff % 128)
        while cand >= 128:
            if d_ff % cand == 0:
                tf = cand
                break
            cand -= 128
        if tf == 0:
            tf = d_ff   # no clean 128-multiple divisor: keep weights resident
    grid_f = d_ff // tf

    # Constant-index weight blocks only need one VMEM buffer; only request it
    # when the weights are big enough for the saving to matter.
    resident_w_bytes = 2 * d_ff * d_model * wsize
    single_buf_w = (grid_f == 1) and (resident_w_bytes > (4 << 20))
    nbuf_w = 1 if single_buf_w else 2

    # Shrink tm if a step still does not fit comfortably.
    while _step_bytes(tm, tf, nbuf_w) > 0.8 * budget and tm > sub:
        tm = max(_round_up(tm // 2, sub), sub)

    grid_m = pl.cdiv(M, tm)                  # ragged M -> partial last block

    # ---- specs --------------------------------------------------------------
    def _wspec(shape, index_map):
        if single_buf_w and hasattr(pl, "Buffered"):
            try:
                return pl.BlockSpec(shape, index_map,
                                    pipeline_mode=pl.Buffered(1))
            except TypeError:                 # older jax: no pipeline_mode kwarg
                pass
        return pl.BlockSpec(shape, index_map)

    in_specs = [
        pl.BlockSpec((tm, d_model), lambda i, f: (i, 0)),     # x rows
        _wspec((tf, d_model), lambda i, f: (f, 0)),           # w1 tile
        _wspec((1, tf), lambda i, f: (0, f)),                 # b1 tile
        _wspec((d_model, tf), lambda i, f: (0, f)),           # w2 tile
        pl.BlockSpec((1, d_model), lambda i, f: (0, 0)),      # b2 (tiny, constant)
    ]
    out_spec = pl.BlockSpec((tm, d_model), lambda i, f: (i, 0))

    needed = _step_bytes(tm, tf, nbuf_w)
    vmem_limit = int(min(max(needed + needed // 2, 32 << 20), budget))

    weight_reads = 1 if grid_f == 1 else grid_m
    cost = pl.CostEstimate(
        flops=4 * M * d_model * d_ff,                         # two matmuls
        transcendentals=0,
        bytes_accessed=(M * d_model * (xsize + osize)
                        + weight_reads * 2 * d_ff * d_model * wsize
                        + (d_ff + d_model) * bsize),
    )

    out2d = pl.pallas_call(
        functools.partial(_ffn_kernel, precision=precision),
        out_shape=jax.ShapeDtypeStruct((M, d_model), out_dtype),
        grid_spec=pltpu.PrefetchScalarGridSpec(
            num_scalar_prefetch=0,
            grid=(grid_m, grid_f),
            in_specs=in_specs,
            out_specs=out_spec,
            scratch_shapes=[pltpu.VMEM((tm, d_model), jnp.float32)],
        ),
        compiler_params=pltpu.CompilerParams(
            dimension_semantics=("parallel", "arbitrary"),
            vmem_limit_bytes=vmem_limit,
        ),
        cost_estimate=cost,
    )(x2d, w1, b1_2d, w2, b2_2d)

    return out2d.reshape(batch, seq, d_model)


def _init_linear(key, out_features, in_features, dtype=jnp.float32):
    # Mimic PyTorch nn.Linear default init: U(-1/sqrt(in), 1/sqrt(in)).
    kw, kb = jax.random.split(key)
    bound = 1.0 / (in_features ** 0.5)
    w = jax.random.uniform(kw, (out_features, in_features), dtype,
                           minval=-bound, maxval=bound)
    b = jax.random.uniform(kb, (out_features,), dtype,
                           minval=-bound, maxval=bound)
    return w, b


if __name__ == "__main__":
    batch, seq, d_model, d_ff = 2, 8, 32, 64

    key = jax.random.PRNGKey(0)
    kx, k1, k2 = jax.random.split(key, 3)

    x = jax.random.normal(kx, (batch, seq, d_model), dtype=jnp.float32)
    w1, b1 = _init_linear(k1, d_ff, d_model)
    w2, b2 = _init_linear(k2, d_model, d_ff)

    out = positionwise_feed_forward(x, w1, b1, w2, b2)
    out = jax.block_until_ready(out)

    # Reference in plain JAX (dropout = identity in eval mode), exact fp32.
    h_ref = jnp.maximum(
        jnp.dot(x, w1.T, precision=lax.Precision.HIGHEST) + b1, 0.0)
    ref = jnp.dot(h_ref, w2.T, precision=lax.Precision.HIGHEST) + b2

    assert out.shape == (batch, seq, d_model)
    assert jnp.allclose(out, ref, atol=1e-4, rtol=1e-4), \
        float(jnp.max(jnp.abs(out - ref)))

    print("KERNEL_OK")
</pallas_src>

<mosaic_0001>
module attributes {stable_mosaic.version = 11 : i64} {
  func.func @_ffn_kernel(%arg0: i32, %arg1: i32, %arg2: memref<8x32xf32, #tpu.memory_space<vmem>>, %arg3: memref<64x32xf32, #tpu.memory_space<vmem>>, %arg4: memref<1x64xf32, #tpu.memory_space<vmem>>, %arg5: memref<32x64xf32, #tpu.memory_space<vmem>>, %arg6: memref<1x32xf32, #tpu.memory_space<vmem>>, %arg7: memref<8x32xf32, #tpu.memory_space<vmem>>, %arg8: memref<8x32xf32, #tpu.memory_space<vmem>>) attributes {dimension_semantics = [#tpu.dimension_semantics<parallel>, #tpu.dimension_semantics<arbitrary>], iteration_bounds = array<i64: 2, 1>, scalar_prefetch = 0 : i64, scratch_operands = 1 : i64, tpu.core_type = #tpu.core_type<tc>, window_params = [{transform_indices = @transform_0, window_bounds = array<i64: 8, 32>}, {transform_indices = @transform_1, window_bounds = array<i64: 64, 32>}, {transform_indices = @transform_2, window_bounds = array<i64: 1, 64>}, {transform_indices = @transform_3, window_bounds = array<i64: 32, 64>}, {pipeline_mode = #tpu.pipeline_mode<synchronous>, transform_indices = @transform_4, window_bounds = array<i64: 1, 32>}, {transform_indices = @transform_5, window_bounds = array<i64: 8, 32>}]} {
    %c0_i32 = arith.constant 0 : i32
    %0 = arith.cmpi eq, %arg1, %c0_i32 : i32
    %1 = arith.extui %0 : i1 to i32
    %c0_i32_0 = arith.constant 0 : i32
    %2 = arith.cmpi ne, %1, %c0_i32_0 : i32
    scf.if %2 {
      %cst_16 = arith.constant 0.000000e+00 : f32
      %19 = vector.broadcast %cst_16 : f32 to vector<8x32xf32>
      %c0_17 = arith.constant 0 : index
      %c0_18 = arith.constant 0 : index
      %20 = vector.load %arg8[%c0_17, %c0_18] : memref<8x32xf32, #tpu.memory_space<vmem>>, vector<8x32xf32>
      tpu.vector_store %arg8[%c0_17, %c0_18], %19 {strides = array<i32>} : memref<8x32xf32, #tpu.memory_space<vmem>>, vector<8x32xf32>,
    } else {
    }
    %c0 = arith.constant 0 : index
    %c0_1 = arith.constant 0 : index
    %3 = vector.load %arg2[%c0, %c0_1] : memref<8x32xf32, #tpu.memory_space<vmem>>, vector<8x32xf32>
    %c0_2 = arith.constant 0 : index
    %c0_3 = arith.constant 0 : index
    %4 = vector.load %arg3[%c0_2, %c0_3] : memref<64x32xf32, #tpu.memory_space<vmem>>, vector<64x32xf32>
    %cst = arith.constant dense<0.000000e+00> : vector<8x64xf32>
    %5 = tpu.matmul %3, %4, %cst {dimension_numbers = #tpu.dot_dimension_numbers<[1], [1], [0], [0], [0, 0, 1, 0], [], []>, precision = #tpu.contract_precision<fp32>} : vector<8x32xf32>, vector<64x32xf32>, vector<8x64xf32> -> vector<8x64xf32>
    %c0_4 = arith.constant 0 : index
    %c0_5 = arith.constant 0 : index
    %6 = vector.load %arg4[%c0_4, %c0_5] : memref<1x64xf32, #tpu.memory_space<vmem>>, vector<1x64xf32>
    %7 = vector.broadcast %6 : vector<1x64xf32> to vector<8x64xf32>
    %8 = arith.addf %5, %7 : vector<8x64xf32>
    %cst_6 = arith.constant 0.000000e+00 : f32
    %9 = vector.broadcast %cst_6 : f32 to vector<8x64xf32>
    %10 = arith.maximumf %8, %9 : vector<8x64xf32>
    %c0_7 = arith.constant 0 : index
    %c0_8 = arith.constant 0 : index
    %11 = vector.load %arg8[%c0_7, %c0_8] : memref<8x32xf32, #tpu.memory_space<vmem>>, vector<8x32xf32>
    %c0_9 = arith.constant 0 : index
    %c0_10 = arith.constant 0 : index
    %12 = vector.load %arg5[%c0_9, %c0_10] : memref<32x64xf32, #tpu.memory_space<vmem>>, vector<32x64xf32>
    %cst_11 = arith.constant dense<0.000000e+00> : vector<8x32xf32>
    %13 = tpu.matmul %10, %12, %cst_11 {dimension_numbers = #tpu.dot_dimension_numbers<[1], [1], [0], [0], [0, 0, 1, 0], [], []>, precision = #tpu.contract_precision<fp32>} : vector<8x64xf32>, vector<32x64xf32>, vector<8x32xf32> -> vector<8x32xf32>
    %14 = arith.addf %11, %13 : vector<8x32xf32>
    %c0_12 = arith.constant 0 : index
    %c0_13 = arith.constant 0 : index
    %15 = vector.load %arg8[%c0_12, %c0_13] : memref<8x32xf32, #tpu.memory_space<vmem>>, vector<8x32xf32>
    tpu.vector_store %arg8[%c0_12, %c0_13], %14 {strides = array<i32>} : memref<8x32xf32, #tpu.memory_space<vmem>>, vector<8x32xf32>,
    %c0_i32_14 = arith.constant 0 : i32
    %16 = arith.cmpi eq, %arg1, %c0_i32_14 : i32
    %17 = arith.extui %16 : i1 to i32
    %c0_i32_15 = arith.constant 0 : i32
    %18 = arith.cmpi ne, %17, %c0_i32_15 : i32
    scf.if %18 {
      %c0_16 = arith.constant 0 : index
      %c0_17 = arith.constant 0 : index
      %19 = vector.load %arg8[%c0_16, %c0_17] : memref<8x32xf32, #tpu.memory_space<vmem>>, vector<8x32xf32>
      %c0_18 = arith.constant 0 : index
      %c0_19 = arith.constant 0 : index
      %20 = vector.load %arg6[%c0_18, %c0_19] : memref<1x32xf32, #tpu.memory_space<vmem>>, vector<1x32xf32>
      %21 = vector.broadcast %20 : vector<1x32xf32> to vector<8x32xf32>
      %22 = arith.addf %19, %21 : vector<8x32xf32>
      %c0_20 = arith.constant 0 : index
      %c0_21 = arith.constant 0 : index
      %23 = vector.load %arg7[%c0_20, %c0_21] : memref<8x32xf32, #tpu.memory_space<vmem>>, vector<8x32xf32>
      tpu.vector_store %arg7[%c0_20, %c0_21], %22 {strides = array<i32>} : memref<8x32xf32, #tpu.memory_space<vmem>>, vector<8x32xf32>,
    } else {
    }
    return
  }
  func.func @transform_0(%arg0: i32, %arg1: i32) -> (i32, i32) {
    %c0_i32 = arith.constant 0 : i32
    %c0_i32_0 = arith.constant 0 : i32
    return %arg0, %c0_i32 : i32, i32
  }
  func.func @transform_1(%arg0: i32, %arg1: i32) -> (i32, i32) {
    %c0_i32 = arith.constant 0 : i32
    %c0_i32_0 = arith.constant 0 : i32
    return %arg1, %c0_i32 : i32, i32
  }
  func.func @transform_2(%arg0: i32, %arg1: i32) -> (i32, i32) {
    %c0_i32 = arith.constant 0 : i32
    %c0_i32_0 = arith.constant 0 : i32
    return %c0_i32, %arg1 : i32, i32
  }
  func.func @transform_3(%arg0: i32, %arg1: i32) -> (i32, i32) {
    %c0_i32 = arith.constant 0 : i32
    %c0_i32_0 = arith.constant 0 : i32
    return %c0_i32, %arg1 : i32, i32
  }
  func.func @transform_4(%arg0: i32, %arg1: i32) -> (i32, i32) {
    %c0_i32 = arith.constant 0 : i32
    %c0_i32_0 = arith.constant 0 : i32
    %c0_i32_1 = arith.constant 0 : i32
    return %c0_i32, %c0_i32_0 : i32, i32
  }
  func.func @transform_5(%arg0: i32, %arg1: i32) -> (i32, i32) {
    %c0_i32 = arith.constant 0 : i32
    %c0_i32_0 = arith.constant 0 : i32
    return %arg0, %c0_i32 : i32, i32
  }
}

</mosaic_0001>

<llo_original>
// kernel: tpu_custom_call.1
$region0: #{tpu_custom_call.1}
  #allocation0 [shape = 'u32[]', space=smem, size = 0x4, offset = 0x4, fixed_abs, tag = 'smem constant byte address 0x4 - core index']
  #allocation1 [shape = 'u32[144,128]{1,0:T(1,128)}', space=vmem, size = 0x12000, scoped, tag = 'internal scratch']
  #allocation2 [shape = 'f32[8,32]{1,0:T(8,128)}', space=vmem, size = 0x1000, scoped, tag = 'scratch operand']
  %s0 = inlined_call_operand.vmem [shape: f32[16,32], index: 0, kind: input, shape index: {}]
  %s1 = inlined_call_operand.vmem [shape: f32[64,32], index: 1, kind: input, shape index: {}]
  %s2 = inlined_call_operand.vmem [shape: f32[1,64], index: 2, kind: input, shape index: {}]
  %s3 = inlined_call_operand.vmem [shape: f32[32,64], index: 3, kind: input, shape index: {}]
  %s4 = inlined_call_operand.vmem [shape: f32[1,32], index: 4, kind: input, shape index: {}]
  %s5 = inlined_call_operand.hbm [shape: f32[16,32], index: 5, kind: output, shape index: {}]
  %s6 = sld [smem:[#allocation0]]
  $region61: #{tpu_custom_call.1} parent=0
    _
  %s8 = ssub.s32 1, %s6
  %s9 = scalar_select 0, %s8, %s6
  $region1: #{tpu_custom_call.1} parent=0
    #allocation3 [shape = 'u8[8192]{0}', space=vmem, size = 0x2000, scoped, tag = 'output window, operand 0']
    #allocation4 [shape = 's32[2]{0}', space=sflag, size = 0x8, scoped, tag = 'scoped memory for tpu_custom_call.1']
    %10 = vsyncpa [#allocation4], 0
    %s11 = scalar_lea.sflag [#allocation4], 1
    %12 = vsyncpa %s11, 0
    loop: start=0, step=1, limit=4
    $region2: #{tpu_custom_call.1} parent=1 // loop_pre_header
      _
    $region3: #{tpu_custom_call.1} parent=1 // loop_header
      %s14 = sphi 0, %s18
      %p15 = scmp.ge.s32.totalorder %s14, 4
      %s21 = sphi 0, %s33
      %s22 = sphi 0, %s29
      %s23 = sphi 0, %s21
      %s24 = sphi 0, %s22
      %s25 = sphi 0, %s23
      %s26 = sphi 0, %s24
      %s36 = sphi 0, %s38
      %s39 = sphi 0, %s36
      %s40 = sphi 0, %s39
      %s56 = sphi 0, %s40
      %s62 = sphi 0, %s64
      %s65 = sphi 0, %s62
      %s66 = sphi 0, %s65
      %s82 = sphi 0, %s66
      %s88 = sphi 0, %s90
      %s91 = sphi 0, %s88
      %s92 = sphi 0, %s91
      %s108 = sphi 0, %s92
      %s114 = sphi 0, %s116
      %s117 = sphi 0, %s114
      %s118 = sphi 0, %s117
      %s134 = sphi 0, %s118
      %s138 = sphi 0, %s138
      %s140 = sphi 0, %s138
      %s141 = sphi 0, %s140
      %s155 = sphi 0, %s141
      %s161 = sphi 0, %s163
      %s164 = sphi 0, %s161
      %s165 = sphi 0, %s164
      %s181 = sphi 0, %s165
    $region4: #{tpu_custom_call.1} parent=1 // loop_header_branch
      %17 = sbr.rel (%p15) target = $region8
    $region5: #{tpu_custom_call.1} parent=1 // loop_body
      %s19 = ssub.s32 %s14, 1
      %s20 = ssub.s32 %s14, 2
      %s27 = sadd.s32 1, %s22
      %p28 = scmp.ge.s32.totalorder %s27, 1
      %s29 = scalar_select %p28, 0, %s27
      %s30 = sadd.s32 1, %s21
      %s31 = scalar_select %p28, %s30, %s21
      %p32 = scmp.ge.s32.totalorder %s31, 2
      %s33 = scalar_select %p32, 0, %s31
      %s34 = ssub.s32 %s21, %s33
      %p35 = scmp.eq.s32.totalorder %s34, 0
      %s37 = sadd.s32 %s36, 1
      %s38 = scalar_select %p35, %s36, %s37
      %p41 = pneg %p35
      %p42 = scmp.eq.s32.totalorder %s14, 1
      %p43 = por %p41, %p42
      %p44 = scmp.ne.s32.totalorder %s36, %s39
      %p45 = scmp.eq.s32.totalorder %s14, 0
      %p46 = por %p44, %p45
      %p47 = scmp.ne.s32.totalorder %s36, %s39
      %p48 = scmp.eq.s32.totalorder %s19, 1
      %p49 = por %p47, %p48
      %p50 = scmp.ne.s32.totalorder %s39, %s40
      %p51 = scmp.eq.s32.totalorder %s19, 0
      %p52 = por %p50, %p51
      %p53 = scmp.ne.s32.totalorder %s39, %s40
      %p54 = scmp.eq.s32.totalorder %s20, 1
      %p55 = por %p53, %p54
      %p57 = scmp.ne.s32.totalorder %s40, %s56
      %p58 = scmp.eq.s32.totalorder %s20, 0
      %p59 = por %p57, %p58
      %s60 = ssub.s32 %s22, %s29
      %p61 = scmp.eq.s32.totalorder %s60, 0
      %s63 = sadd.s32 %s62, 1
      %s64 = scalar_select %p61, %s62, %s63
      %p67 = pneg %p61
      %p68 = scmp.eq.s32.totalorder %s14, 1
      %p69 = por %p67, %p68
      %p70 = scmp.ne.s32.totalorder %s62, %s65
      %p71 = scmp.eq.s32.totalorder %s14, 0
      %p72 = por %p70, %p71
      %p73 = scmp.ne.s32.totalorder %s62, %s65
      %p74 = scmp.eq.s32.totalorder %s19, 1
      %p75 = por %p73, %p74
      %p76 = scmp.ne.s32.totalorder %s65, %s66
      %p77 = scmp.eq.s32.totalorder %s19, 0
      %p78 = por %p76, %p77
      %p79 = scmp.ne.s32.totalorder %s65, %s66
      %p80 = scmp.eq.s32.totalorder %s20, 1
      %p81 = por %p79, %p80
      %p83 = scmp.ne.s32.totalorder %s66, %s82
      %p84 = scmp.eq.s32.totalorder %s20, 0
      %p85 = por %p83, %p84
      %s86 = ssub.s32 %s22, %s29
      %p87 = scmp.eq.s32.totalorder %s86, 0
      %s89 = sadd.s32 %s88, 1
      %s90 = scalar_select %p87, %s88, %s89
      %p93 = pneg %p87
      %p94 = scmp.eq.s32.totalorder %s14, 1
      %p95 = por %p93, %p94
      %p96 = scmp.ne.s32.totalorder %s88, %s91
      %p97 = scmp.eq.s32.totalorder %s14, 0
      %p98 = por %p96, %p97
      %p99 = scmp.ne.s32.totalorder %s88, %s91
      %p100 = scmp.eq.s32.totalorder %s19, 1
      %p101 = por %p99, %p100
      %p102 = scmp.ne.s32.totalorder %s91, %s92
      %p103 = scmp.eq.s32.totalorder %s19, 0
      %p104 = por %p102, %p103
      %p105 = scmp.ne.s32.totalorder %s91, %s92
      %p106 = scmp.eq.s32.totalorder %s20, 1
      %p107 = por %p105, %p106
      %p109 = scmp.ne.s32.totalorder %s92, %s108
      %p110 = scmp.eq.s32.totalorder %s20, 0
      %p111 = por %p109, %p110
      %s112 = ssub.s32 %s22, %s29
      %p113 = scmp.eq.s32.totalorder %s112, 0
      %s115 = sadd.s32 %s114, 1
      %s116 = scalar_select %p113, %s114, %s115
      %p119 = pneg %p113
      %p120 = scmp.eq.s32.totalorder %s14, 1
      %p121 = por %p119, %p120
      %p122 = scmp.ne.s32.totalorder %s114, %s117
      %p123 = scmp.eq.s32.totalorder %s14, 0
      %p124 = por %p122, %p123
      %p125 = scmp.ne.s32.totalorder %s114, %s117
      %p126 = scmp.eq.s32.totalorder %s19, 1
      %p127 = por %p125, %p126
      %p128 = scmp.ne.s32.totalorder %s117, %s118
      %p129 = scmp.eq.s32.totalorder %s19, 0
      %p130 = por %p128, %p129
      %p131 = scmp.ne.s32.totalorder %s117, %s118
      %p132 = scmp.eq.s32.totalorder %s20, 1
      %p133 = por %p131, %p132
      %p135 = scmp.ne.s32.totalorder %s118, %s134
      %p136 = scmp.eq.s32.totalorder %s20, 0
      %p137 = por %p135, %p136
      %s139 = sadd.s32 %s138, 1
      %p142 = scmp.eq.s32.totalorder %s14, 1
      %p143 = scmp.ne.s32.totalorder %s138, %s140
      %p144 = scmp.eq.s32.totalorder %s14, 0
      %p145 = por %p143, %p144
      %p146 = scmp.ne.s32.totalorder %s138, %s140
      %p147 = scmp.eq.s32.totalorder %s19, 1
      %p148 = por %p146, %p147
      %p149 = scmp.ne.s32.totalorder %s140, %s141
      %p150 = scmp.eq.s32.totalorder %s19, 0
      %p151 = por %p149, %p150
      %p152 = scmp.ne.s32.totalorder %s140, %s141
      %p153 = scmp.eq.s32.totalorder %s20, 1
      %p154 = por %p152, %p153
      %p156 = scmp.ne.s32.totalorder %s141, %s155
      %p157 = scmp.eq.s32.totalorder %s20, 0
      %p158 = por %p156, %p157
      %s159 = ssub.s32 %s21, %s33
      %p160 = scmp.eq.s32.totalorder %s159, 0
      %s162 = sadd.s32 %s161, 1
      %s163 = scalar_select %p160, %s161, %s162
      %p166 = pneg %p160
      %p167 = scmp.eq.s32.totalorder %s14, 1
      %p168 = por %p166, %p167
      %p169 = scmp.ne.s32.totalorder %s161, %s164
      %p170 = scmp.eq.s32.totalorder %s14, 0
      %p171 = por %p169, %p170
      %p172 = scmp.ne.s32.totalorder %s161, %s164
      %p173 = scmp.eq.s32.totalorder %s19, 1
      %p174 = por %p172, %p173
      %p175 = scmp.ne.s32.totalorder %s164, %s165
      %p176 = scmp.eq.s32.totalorder %s19, 0
      %p177 = por %p175, %p176
      %p178 = scmp.ne.s32.totalorder %s164, %s165
      %p179 = scmp.eq.s32.totalorder %s20, 1
      %p180 = por %p178, %p179
      %p182 = scmp.ne.s32.totalorder %s165, %s181
      %p183 = scmp.eq.s32.totalorder %s20, 0
      %p184 = por %p182, %p183
      %p185 = scmp.le.s32.totalorder 1, %s14
      %p186 = scmp.lt.s32.totalorder %s14, 3
      %p187 = pnand %p185, %p186
      %p188 = pneg %p187
      // Predicated region
      $region9: #{tpu_custom_call.1} parent=5 // pred_check
        _
      $region10: #{tpu_custom_call.1} parent=5 // pred_check_branch
        %190 = sbr.rel (%p187) target = $region12
      $region11: #{tpu_custom_call.1} parent=5 // pred_region
        %s191 = ssub.s32 %s14, 1
        // Predicated region
        $region13: #{tpu_custom_call.1} parent=11 // pred_check
          %p192 = pneg %p78
        $region14: #{tpu_custom_call.1} parent=11 // pred_check_branch
          %194 = sbr.rel (%p192) target = $region16
        $region15: #{tpu_custom_call.1} parent=11 // pred_region
          %s195 = smul.u32 8, %s24
          %p196 = scmp.lt.s32.totalorder %s195, 7
          %s197 = scalar_select %p196, %s195, 7
          %s198 = smul.addr %s197, 8
          %s199 = scalar_lea.vmem %s1, %s198
          %s200 = smul.u32 8, %s24
        $region16: #{tpu_custom_call.1} parent=11 // pred_fallthru
          _
        // Predicated region
        $region17: #{tpu_custom_call.1} parent=11 // pred_check
          %p201 = pneg %p104
        $region18: #{tpu_custom_call.1} parent=11 // pred_check_branch
          %203 = sbr.rel (%p201) target = $region20
        $region19: #{tpu_custom_call.1} parent=11 // pred_region
          %p204 = scmp.lt.s32.totalorder %s24, 0
          %s205 = scalar_select %p204, %s24, 0
          %s206 = scalar_lea.vmem %s2, %s205
        $region20: #{tpu_custom_call.1} parent=11 // pred_fallthru
          _
        // Predicated region
        $region21: #{tpu_custom_call.1} parent=11 // pred_check
          %p207 = pneg %p130
        $region22: #{tpu_custom_call.1} parent=11 // pred_check_branch
          %209 = sbr.rel (%p207) target = $region24
        $region23: #{tpu_custom_call.1} parent=11 // pred_region
          %p210 = scmp.lt.s32.totalorder %s24, 0
          %s211 = scalar_select %p210, %s24, 0
          %s212 = smul.addr %s211, 8
          %s213 = scalar_lea.vmem %s3, %s212
        $region24: #{tpu_custom_call.1} parent=11 // pred_fallthru
          _
        // Predicated region
        $region25: #{tpu_custom_call.1} parent=11 // pred_check
          %p214 = pneg %p151
        $region26: #{tpu_custom_call.1} parent=11 // pred_check_branch
          %216 = sbr.rel (%p214) target = $region28
        $region27: #{tpu_custom_call.1} parent=11 // pred_region
          _
        $region28: #{tpu_custom_call.1} parent=11 // pred_fallthru
          _
      $region12: #{tpu_custom_call.1} parent=5 // pred_fallthru
        _
      %p217 = scmp.lt.s32.totalorder %s14, 2
      // Predicated region
      $region29: #{tpu_custom_call.1} parent=5 // pred_check
        %p218 = pneg %p217
      $region30: #{tpu_custom_call.1} parent=5 // pred_check_branch
        %220 = sbr.rel (%p218) target = $region32
      $region31: #{tpu_custom_call.1} parent=5 // pred_region
        // Predicated region
        $region33: #{tpu_custom_call.1} parent=31 // pred_check
          %p221 = pneg %p46
        $region34: #{tpu_custom_call.1} parent=31 // pred_check_branch
          %223 = sbr.rel (%p221) target = $region36
        $region35: #{tpu_custom_call.1} parent=31 // pred_region
          %p224 = scmp.lt.s32.totalorder %s21, 1
          %s225 = scalar_select %p224, %s21, 1
          %s226 = smul.addr %s225, 8
          %s227 = scalar_lea.vmem %s0, %s226
        $region36: #{tpu_custom_call.1} parent=31 // pred_fallthru
          _
      $region32: #{tpu_custom_call.1} parent=5 // pred_fallthru
        _
      %p228 = scmp.le.s32.totalorder 1, %s14
      %p229 = scmp.lt.s32.totalorder %s14, 3
      %p230 = pnand %p228, %p229
      %p231 = pneg %p230
      // Predicated region
      $region37: #{tpu_custom_call.1} parent=5 // pred_check
        _
      $region38: #{tpu_custom_call.1} parent=5 // pred_check_branch
        %233 = sbr.rel (%p230) target = $region40
      $region39: #{tpu_custom_call.1} parent=5 // pred_region
        %s234 = ssub.s32 %s14, 1
        %p235 = scmp.lt.s32.totalorder %s23, 1
        %s236 = scalar_select %p235, %s23, 1
        %s237 = smul.addr %s236, 8
        %s238 = scalar_lea.vmem %s0, %s237
        %p239 = pneg %p52
        %p240 = pneg %p49
        %s241 = smul.u32 8, %s24
        %p242 = scmp.lt.s32.totalorder %s241, 7
        %s243 = scalar_select %p242, %s241, 7
        %s244 = smul.addr %s243, 8
        %s245 = scalar_lea.vmem %s1, %s244
        %p246 = pneg %p78
        %p247 = pneg %p75
        %p248 = scmp.lt.s32.totalorder %s24, 0
        %s249 = scalar_select %p248, %s24, 0
        %s250 = scalar_lea.vmem %s2, %s249
        %p251 = pneg %p104
        %p252 = pneg %p101
        %p253 = scmp.lt.s32.totalorder %s24, 0
        %s254 = scalar_select %p253, %s24, 0
        %s255 = smul.addr %s254, 8
        %s256 = scalar_lea.vmem %s3, %s255
        %p257 = pneg %p130
        %p258 = pneg %p127
        %p259 = pneg %p151
        %p260 = pneg %p148
        %p261 = pneg %p177
        %p262 = pneg %p174
        %s263 = sand.u32 %s164, 1
        %s264 = scalar_lea.sflag [#allocation4], %s263
        %s265 = sand.u32 %s164, 1
        %s266 = smul.addr %s265, 8
        %s267 = scalar_lea.vmem [#allocation3], %s266
        %p268 = scmp.lt.s32.totalorder %s23, 1
        %s269 = scalar_select %p268, %s23, 1
        %s270 = smul.addr %s269, 8
        %s271 = scalar_lea.vmem %s0, %s270
        %s272 = smul.u32 8, %s24
        %p273 = scmp.lt.s32.totalorder %s272, 7
        %s274 = scalar_select %p273, %s272, 7
        %s275 = smul.addr %s274, 8
        %s276 = scalar_lea.vmem %s1, %s275
        %s277 = smul.u32 8, %s24
        %p278 = scmp.lt.s32.totalorder %s24, 0
        %s279 = scalar_select %p278, %s24, 0
        %s280 = scalar_lea.vmem %s2, %s279
        %p281 = scmp.lt.s32.totalorder %s24, 0
        %s282 = scalar_select %p281, %s24, 0
        %s283 = smul.addr %s282, 8
        %s284 = scalar_lea.vmem %s3, %s283
        %p285 = scmp.eq.s32.totalorder %s24, 0
        // Predicated region
        $region41: #{tpu_custom_call.1} parent=39 // pred_check
          %p286 = pneg %p285
        $region42: #{tpu_custom_call.1} parent=39 // pred_check_branch
          %288 = sbr.rel (%p286) target = $region44
        $region43: #{tpu_custom_call.1} parent=39 // pred_region
          %vm289 = vcmask 261120
          %290 = vst.msk [vmem:[#allocation2] sm:$0xff] %vm289, 0.0
        $region44: #{tpu_custom_call.1} parent=39 // pred_fallthru
          _
        %v291 = vld [vmem:[%s271] sm:$0xff]
        %v292 = vld [vmem:[%s276] sm:$0xff]
        %v293 = vld [vmem:[%s276 + $0x8] sm:$0xff]
        %v294 = vld [vmem:[%s276 + $0x10] sm:$0xff]
        %v295 = vld [vmem:[%s276 + $0x18] sm:$0xff]
        %v296 = vld [vmem:[%s276 + $0x20] sm:$0xff]
        %v297 = vld [vmem:[%s276 + $0x28] sm:$0xff]
        %v298 = vld [vmem:[%s276 + $0x30] sm:$0xff]
        %v299 = vld [vmem:[%s276 + $0x38] sm:$0xff]
        %v300 = vld [vmem:[%s280] sm:$0x1]
        %v302 = vlaneseq
        %v303 = vshrl.u32 %v302, 7
        %v304 = vsub.s32 0, %v303
        %v305 = vrot.slane %v300, %v304
        %vm307 = vcmask 261120
        %v309 = vsel %vm307, %v291, 0
        %v312 = vsel %vm307, %v292, 0
        %v315 = vsel %vm307, %v293, 0
        %v318 = vsel %vm307, %v294, 0
        %v321 = vsel %vm307, %v295, 0
        %v324 = vsel %vm307, %v296, 0
        %v327 = vsel %vm307, %v297, 0
        %v330 = vsel %vm307, %v298, 0
        %v333 = vsel %vm307, %v299, 0
        %335 = vmatprep.subr.mxu0 0.0
        %v336 = vand.u32 %v312, 4294901760
        %337 = vmatpush1.xpose.msra.mxu0 %v336
        %338 = vmatprep.subr.mxu0 0.0
        %v339 = vand.u32 %v315, 4294901760
        %340 = vmatpush1.xpose.msra.mxu0 %v339
        %341 = vmatprep.subr.mxu0 0.0
        %v342 = vand.u32 %v318, 4294901760
        %343 = vmatpush1.xpose.msra.mxu0 %v342
        %344 = vmatprep.subr.mxu0 0.0
        %v345 = vand.u32 %v321, 4294901760
        %346 = vmatpush1.xpose.msra.mxu0 %v345
        %347 = vmatprep.subr.mxu0 0.0
        %v348 = vand.u32 %v324, 4294901760
        %349 = vmatpush1.xpose.msra.mxu0 %v348
        %350 = vmatprep.subr.mxu0 0.0
        %v351 = vand.u32 %v327, 4294901760
        %352 = vmatpush1.xpose.msra.mxu0 %v351
        %353 = vmatprep.subr.mxu0 0.0
        %v354 = vand.u32 %v330, 4294901760
        %355 = vmatpush1.xpose.msra.mxu0 %v354
        %356 = vmatprep.subr.mxu0 0.0
        %v357 = vand.u32 %v333, 4294901760
        %358 = vmatpush1.xpose.msra.mxu0 %v357
        %359 = vmatprep.subr.mxu0 0.0
        %360 = vmatpush1.xpose.msra.mxu0 0.0
        %361 = vmatprep.subr.mxu0 0.0
        %362 = vmatpush1.xpose.msra.mxu0 0.0
        %363 = vmatprep.subr.mxu0 0.0
        %364 = vmatpush1.xpose.msra.mxu0 0.0
        %365 = vmatprep.subr.mxu0 0.0
        %366 = vmatpush1.xpose.msra.mxu0 0.0
        %367 = vmatprep.subr.mxu0 0.0
        %368 = vmatpush1.xpose.msra.mxu0 0.0
        %369 = vmatprep.subr.mxu0 0.0
        %370 = vmatpush1.xpose.msra.mxu0 0.0
        %371 = vmatprep.subr.mxu0 0.0
        %372 = vmatpush1.xpose.msra.mxu0 0.0
        %373 = vmatprep.subr.mxu0 0.0
        %374 = vmatpush1.xpose.msra.mxu0 0.0
        %375 = vmatprep.subr.mxu0 0.0
        %376 = vmatpush1.xpose.msra.mxu0 0.0
        %377 = vmatprep.subr.mxu0 0.0
        %378 = vmatpush1.xpose.msra.mxu0 0.0
        %379 = vmatprep.subr.mxu0 0.0
        %380 = vmatpush1.xpose.msra.mxu0 0.0
        %381 = vmatprep.subr.mxu0 0.0
        %382 = vmatpush1.xpose.msra.mxu0 0.0
        %383 = vmatprep.subr.mxu0 0.0
        %384 = vmatpush1.xpose.msra.mxu0 0.0
        %385 = vmatprep.subr.mxu0 0.0
        %386 = vmatpush1.xpose.msra.mxu0 0.0
        %387 = vmatprep.subr.mxu0 0.0
        %388 = vmatpush1.xpose.msra.mxu0 0.0
        %389 = vmatprep.subr.mxu0 0.0
        %390 = vmatpush1.xpose.msra.mxu0 0.0
        %391 = vmatprep.subr.mxu0 0.0
        %392 = vmatpush1.xpose.msra.mxu0 0.0
        %393 = vmatprep.subr.mxu0 0.0
        %394 = vmatpush1.xpose.msra.mxu0 0.0
        %395 = vmatprep.subr.mxu0 0.0
        %396 = vmatpush1.xpose.msra.mxu0 0.0
        %397 = vmatprep.subr.mxu0 0.0
        %398 = vmatpush1.xpose.msra.mxu0 0.0
        %399 = vmatprep.subr.mxu0 0.0
        %400 = vmatpush1.xpose.msra.mxu0 0.0
        %401 = vmatprep.subr.mxu0 0.0
        %402 = vmatpush1.xpose.msra.mxu0 0.0
        %403 = vmatprep.subr.mxu0 0.0
        %404 = vmatpush1.xpose.msra.mxu0 0.0
        %405 = vmatprep.subr.mxu0 0.0
        %406 = vmatpush1.xpose.msra.mxu0 0.0
        %407 = vmatprep.mubr.f32.mxu0 0.0
        %v408 = vand.u32 %v309, 4294901760
        %v409 = vsub.f32 %v309, %v408
        %v410 = vand.u32 %v409, 4294901760
        %v411 = vsub.f32 %v409, %v410
        %v412 = vand.u32 %v411, 4294901760
        %413 = vmatmul.mubr.f32.gmra.mrb[0].mxu0 %v412
        %v414 = vpop.f32.mrb[0].mxu0
        %v415 = vadd.f32 %v305, %v414
        %v416 = vpop.f32.mrb[0].mxu0
        %417 = vdwg.mxu0
        %418 = vmatprep.subr.mxu0 0.0
        %v419 = vand.u32 %v312, 4294901760
        %v420 = vsub.f32 %v312, %v419
        %v421 = vand.u32 %v420, 4294901760
        %v422 = vsub.f32 %v420, %v421
        %v423 = vand.u32 %v422, 4294901760
        %424 = vmatpush1.xpose.msra.mxu0 %v423
        %425 = vmatprep.subr.mxu0 0.0
        %v426 = vand.u32 %v315, 4294901760
        %v427 = vsub.f32 %v315, %v426
        %v428 = vand.u32 %v427, 4294901760
        %v429 = vsub.f32 %v427, %v428
        %v430 = vand.u32 %v429, 4294901760
        %431 = vmatpush1.xpose.msra.mxu0 %v430
        %432 = vmatprep.subr.mxu0 0.0
        %v433 = vand.u32 %v318, 4294901760
        %v434 = vsub.f32 %v318, %v433
        %v435 = vand.u32 %v434, 4294901760
        %v436 = vsub.f32 %v434, %v435
        %v437 = vand.u32 %v436, 4294901760
        %438 = vmatpush1.xpose.msra.mxu0 %v437
        %439 = vmatprep.subr.mxu0 0.0
        %v440 = vand.u32 %v321, 4294901760
        %v441 = vsub.f32 %v321, %v440
        %v442 = vand.u32 %v441, 4294901760
        %v443 = vsub.f32 %v441, %v442
        %v444 = vand.u32 %v443, 4294901760
        %445 = vmatpush1.xpose.msra.mxu0 %v444
        %446 = vmatprep.subr.mxu0 0.0
        %v447 = vand.u32 %v324, 4294901760
        %v448 = vsub.f32 %v324, %v447
        %v449 = vand.u32 %v448, 4294901760
        %v450 = vsub.f32 %v448, %v449
        %v451 = vand.u32 %v450, 4294901760
        %452 = vmatpush1.xpose.msra.mxu0 %v451
        %453 = vmatprep.subr.mxu0 0.0
        %v454 = vand.u32 %v327, 4294901760
        %v455 = vsub.f32 %v327, %v454
        %v456 = vand.u32 %v455, 4294901760
        %v457 = vsub.f32 %v455, %v456
        %v458 = vand.u32 %v457, 4294901760
        %459 = vmatpush1.xpose.msra.mxu0 %v458
        %460 = vmatprep.subr.mxu0 0.0
        %v461 = vand.u32 %v330, 4294901760
        %v462 = vsub.f32 %v330, %v461
        %v463 = vand.u32 %v462, 4294901760
        %v464 = vsub.f32 %v462, %v463
        %v465 = vand.u32 %v464, 4294901760
        %466 = vmatpush1.xpose.msra.mxu0 %v465
        %467 = vmatprep.subr.mxu0 0.0
        %v468 = vand.u32 %v333, 4294901760
        %v469 = vsub.f32 %v333, %v468
        %v470 = vand.u32 %v469, 4294901760
        %v471 = vsub.f32 %v469, %v470
        %v472 = vand.u32 %v471, 4294901760
        %473 = vmatpush1.xpose.msra.mxu0 %v472
        %474 = vmatprep.subr.mxu0 0.0
        %475 = vmatpush1.xpose.msra.mxu0 0.0
        %476 = vmatprep.subr.mxu0 0.0
        %477 = vmatpush1.xpose.msra.mxu0 0.0
        %478 = vmatprep.subr.mxu0 0.0
        %479 = vmatpush1.xpose.msra.mxu0 0.0
        %480 = vmatprep.subr.mxu0 0.0
        %481 = vmatpush1.xpose.msra.mxu0 0.0
        %482 = vmatprep.subr.mxu0 0.0
        %483 = vmatpush1.xpose.msra.mxu0 0.0
        %484 = vmatprep.subr.mxu0 0.0
        %485 = vmatpush1.xpose.msra.mxu0 0.0
        %486 = vmatprep.subr.mxu0 0.0
        %487 = vmatpush1.xpose.msra.mxu0 0.0
        %488 = vmatprep.subr.mxu0 0.0
        %489 = vmatpush1.xpose.msra.mxu0 0.0
        %490 = vmatprep.subr.mxu0 0.0
        %491 = vmatpush1.xpose.msra.mxu0 0.0
        %492 = vmatprep.subr.mxu0 0.0
        %493 = vmatpush1.xpose.msra.mxu0 0.0
        %494 = vmatprep.subr.mxu0 0.0
        %495 = vmatpush1.xpose.msra.mxu0 0.0
        %496 = vmatprep.subr.mxu0 0.0
        %497 = vmatpush1.xpose.msra.mxu0 0.0
        %498 = vmatprep.subr.mxu0 0.0
        %499 = vmatpush1.xpose.msra.mxu0 0.0
        %500 = vmatprep.subr.mxu0 0.0
        %501 = vmatpush1.xpose.msra.mxu0 0.0
        %502 = vmatprep.subr.mxu0 0.0
        %503 = vmatpush1.xpose.msra.mxu0 0.0
        %504 = vmatprep.subr.mxu0 0.0
        %505 = vmatpush1.xpose.msra.mxu0 0.0
        %506 = vmatprep.subr.mxu0 0.0
        %507 = vmatpush1.xpose.msra.mxu0 0.0
        %508 = vmatprep.subr.mxu0 0.0
        %509 = vmatpush1.xpose.msra.mxu0 0.0
        %510 = vmatprep.subr.mxu0 0.0
        %511 = vmatpush1.xpose.msra.mxu0 0.0
        %512 = vmatprep.subr.mxu0 0.0
        %513 = vmatpush1.xpose.msra.mxu0 0.0
        %514 = vmatprep.subr.mxu0 0.0
        %515 = vmatpush1.xpose.msra.mxu0 0.0
        %516 = vmatprep.subr.mxu0 0.0
        %517 = vmatpush1.xpose.msra.mxu0 0.0
        %518 = vmatprep.subr.mxu0 0.0
        %519 = vmatpush1.xpose.msra.mxu0 0.0
        %520 = vmatprep.subr.mxu0 0.0
        %521 = vmatpush1.xpose.msra.mxu0 0.0
        %522 = vmatprep.mubr.f32.mxu0 0.0
        %v523 = vand.u32 %v309, 4294901760
        %524 = vmatmul.mubr.f32.gmra.mrb[0].mxu0 %v523
        %v525 = vpop.f32.mrb[0].mxu0
        %v526 = vadd.f32 %v415, %v525
        %v527 = vpop.f32.mrb[0].mxu0
        %528 = vdwg.mxu0
        %529 = vmatprep.subr.mxu0 0.0
        %v530 = vand.u32 %v312, 4294901760
        %v531 = vsub.f32 %v312, %v530
        %532 = vmatpush1.xpose.msra.mxu0 %v531
        %533 = vmatprep.subr.mxu0 0.0
        %v534 = vand.u32 %v315, 4294901760
        %v535 = vsub.f32 %v315, %v534
        %536 = vmatpush1.xpose.msra.mxu0 %v535
        %537 = vmatprep.subr.mxu0 0.0
        %v538 = vand.u32 %v318, 4294901760
        %v539 = vsub.f32 %v318, %v538
        %540 = vmatpush1.xpose.msra.mxu0 %v539
        %541 = vmatprep.subr.mxu0 0.0
        %v542 = vand.u32 %v321, 4294901760
        %v543 = vsub.f32 %v321, %v542
        %544 = vmatpush1.xpose.msra.mxu0 %v543
        %545 = vmatprep.subr.mxu0 0.0
        %v546 = vand.u32 %v324, 4294901760
        %v547 = vsub.f32 %v324, %v546
        %548 = vmatpush1.xpose.msra.mxu0 %v547
        %549 = vmatprep.subr.mxu0 0.0
        %v550 = vand.u32 %v327, 4294901760
        %v551 = vsub.f32 %v327, %v550
        %552 = vmatpush1.xpose.msra.mxu0 %v551
        %553 = vmatprep.subr.mxu0 0.0
        %v554 = vand.u32 %v330, 4294901760
        %v555 = vsub.f32 %v330, %v554
        %556 = vmatpush1.xpose.msra.mxu0 %v555
        %557 = vmatprep.subr.mxu0 0.0
        %v558 = vand.u32 %v333, 4294901760
        %v559 = vsub.f32 %v333, %v558
        %560 = vmatpush1.xpose.msra.mxu0 %v559
        %561 = vmatprep.subr.mxu0 0.0
        %562 = vmatpush1.xpose.msra.mxu0 0.0
        %563 = vmatprep.subr.mxu0 0.0
        %564 = vmatpush1.xpose.msra.mxu0 0.0
        %565 = vmatprep.subr.mxu0 0.0
        %566 = vmatpush1.xpose.msra.mxu0 0.0
        %567 = vmatprep.subr.mxu0 0.0
        %568 = vmatpush1.xpose.msra.mxu0 0.0
        %569 = vmatprep.subr.mxu0 0.0
        %570 = vmatpush1.xpose.msra.mxu0 0.0
        %571 = vmatprep.subr.mxu0 0.0
        %572 = vmatpush1.xpose.msra.mxu0 0.0
        %573 = vmatprep.subr.mxu0 0.0
        %574 = vmatpush1.xpose.msra.mxu0 0.0
        %575 = vmatprep.subr.mxu0 0.0
        %576 = vmatpush1.xpose.msra.mxu0 0.0
        %577 = vmatprep.subr.mxu0 0.0
        %578 = vmatpush1.xpose.msra.mxu0 0.0
        %579 = vmatprep.subr.mxu0 0.0
        %580 = vmatpush1.xpose.msra.mxu0 0.0
        %581 = vmatprep.subr.mxu0 0.0
        %582 = vmatpush1.xpose.msra.mxu0 0.0
        %583 = vmatprep.subr.mxu0 0.0
        %584 = vmatpush1.xpose.msra.mxu0 0.0
        %585 = vmatprep.subr.mxu0 0.0
        %586 = vmatpush1.xpose.msra.mxu0 0.0
        %587 = vmatprep.subr.mxu0 0.0
        %588 = vmatpush1.xpose.msra.mxu0 0.0
        %589 = vmatprep.subr.mxu0 0.0
        %590 = vmatpush1.xpose.msra.mxu0 0.0
        %591 = vmatprep.subr.mxu0 0.0
        %592 = vmatpush1.xpose.msra.mxu0 0.0
        %593 = vmatprep.subr.mxu0 0.0
        %594 = vmatpush1.xpose.msra.mxu0 0.0
        %595 = vmatprep.subr.mxu0 0.0
        %596 = vmatpush1.xpose.msra.mxu0 0.0
        %597 = vmatprep.subr.mxu0 0.0
        %598 = vmatpush1.xpose.msra.mxu0 0.0
        %599 = vmatprep.subr.mxu0 0.0
        %600 = vmatpush1.xpose.msra.mxu0 0.0
        %601 = vmatprep.subr.mxu0 0.0
        %602 = vmatpush1.xpose.msra.mxu0 0.0
        %603 = vmatprep.subr.mxu0 0.0
        %604 = vmatpush1.xpose.msra.mxu0 0.0
        %605 = vmatprep.subr.mxu0 0.0
        %606 = vmatpush1.xpose.msra.mxu0 0.0
        %607 = vmatprep.subr.mxu0 0.0
        %608 = vmatpush1.xpose.msra.mxu0 0.0
        %609 = vmatprep.mubr.f32.mxu0 0.0
        %v610 = vand.u32 %v309, 4294901760
        %v611 = vsub.f32 %v309, %v610
        %612 = vmatmul.mubr.f32.gmra.mrb[0].mxu0 %v611
        %v613 = vpop.f32.mrb[0].mxu0
        %v614 = vadd.f32 %v526, %v613
        %v615 = vpop.f32.mrb[0].mxu0
        %616 = vdwg.mxu0
        %617 = vmatprep.subr.mxu0 0.0
        %v618 = vand.u32 %v312, 4294901760
        %619 = vmatpush1.xpose.msra.mxu0 %v618
        %620 = vmatprep.subr.mxu0 0.0
        %v621 = vand.u32 %v315, 4294901760
        %622 = vmatpush1.xpose.msra.mxu0 %v621
        %623 = vmatprep.subr.mxu0 0.0
        %v624 = vand.u32 %v318, 4294901760
        %625 = vmatpush1.xpose.msra.mxu0 %v624
        %626 = vmatprep.subr.mxu0 0.0
        %v627 = vand.u32 %v321, 4294901760
        %628 = vmatpush1.xpose.msra.mxu0 %v627
        %629 = vmatprep.subr.mxu0 0.0
        %v630 = vand.u32 %v324, 4294901760
        %631 = vmatpush1.xpose.msra.mxu0 %v630
        %632 = vmatprep.subr.mxu0 0.0
        %v633 = vand.u32 %v327, 4294901760
        %634 = vmatpush1.xpose.msra.mxu0 %v633
        %635 = vmatprep.subr.mxu0 0.0
        %v636 = vand.u32 %v330, 4294901760
        %637 = vmatpush1.xpose.msra.mxu0 %v636
        %638 = vmatprep.subr.mxu0 0.0
        %v639 = vand.u32 %v333, 4294901760
        %640 = vmatpush1.xpose.msra.mxu0 %v639
        %641 = vmatprep.subr.mxu0 0.0
        %642 = vmatpush1.xpose.msra.mxu0 0.0
        %643 = vmatprep.subr.mxu0 0.0
        %644 = vmatpush1.xpose.msra.mxu0 0.0
        %645 = vmatprep.subr.mxu0 0.0
        %646 = vmatpush1.xpose.msra.mxu0 0.0
        %647 = vmatprep.subr.mxu0 0.0
        %648 = vmatpush1.xpose.msra.mxu0 0.0
        %649 = vmatprep.subr.mxu0 0.0
        %650 = vmatpush1.xpose.msra.mxu0 0.0
        %651 = vmatprep.subr.mxu0 0.0
        %652 = vmatpush1.xpose.msra.mxu0 0.0
        %653 = vmatprep.subr.mxu0 0.0
        %654 = vmatpush1.xpose.msra.mxu0 0.0
        %655 = vmatprep.subr.mxu0 0.0
        %656 = vmatpush1.xpose.msra.mxu0 0.0
        %657 = vmatprep.subr.mxu0 0.0
        %658 = vmatpush1.xpose.msra.mxu0 0.0
        %659 = vmatprep.subr.mxu0 0.0
        %660 = vmatpush1.xpose.msra.mxu0 0.0
        %661 = vmatprep.subr.mxu0 0.0
        %662 = vmatpush1.xpose.msra.mxu0 0.0
        %663 = vmatprep.subr.mxu0 0.0
        %664 = vmatpush1.xpose.msra.mxu0 0.0
        %665 = vmatprep.subr.mxu0 0.0
        %666 = vmatpush1.xpose.msra.mxu0 0.0
        %667 = vmatprep.subr.mxu0 0.0
        %668 = vmatpush1.xpose.msra.mxu0 0.0
        %669 = vmatprep.subr.mxu0 0.0
        %670 = vmatpush1.xpose.msra.mxu0 0.0
        %671 = vmatprep.subr.mxu0 0.0
        %672 = vmatpush1.xpose.msra.mxu0 0.0
        %673 = vmatprep.subr.mxu0 0.0
        %674 = vmatpush1.xpose.msra.mxu0 0.0
        %675 = vmatprep.subr.mxu0 0.0
        %676 = vmatpush1.xpose.msra.mxu0 0.0
        %677 = vmatprep.subr.mxu0 0.0
        %678 = vmatpush1.xpose.msra.mxu0 0.0
        %679 = vmatprep.subr.mxu0 0.0
        %680 = vmatpush1.xpose.msra.mxu0 0.0
        %681 = vmatprep.subr.mxu0 0.0
        %682 = vmatpush1.xpose.msra.mxu0 0.0
        %683 = vmatprep.subr.mxu0 0.0
        %684 = vmatpush1.xpose.msra.mxu0 0.0
        %685 = vmatprep.subr.mxu0 0.0
        %686 = vmatpush1.xpose.msra.mxu0 0.0
        %687 = vmatprep.subr.mxu0 0.0
        %688 = vmatpush1.xpose.msra.mxu0 0.0
        %689 = vmatprep.mubr.f32.mxu0 0.0
        %v690 = vand.u32 %v309, 4294901760
        %v691 = vsub.f32 %v309, %v690
        %v692 = vand.u32 %v691, 4294901760
        %693 = vmatmul.mubr.f32.gmra.mrb[0].mxu0 %v692
        %v694 = vpop.f32.mrb[0].mxu0
        %v695 = vadd.f32 %v614, %v694
        %v696 = vpop.f32.mrb[0].mxu0
        %697 = vdwg.mxu0
        %698 = vmatprep.subr.mxu0 0.0
        %v699 = vand.u32 %v312, 4294901760
        %v700 = vsub.f32 %v312, %v699
        %v701 = vand.u32 %v700, 4294901760
        %702 = vmatpush1.xpose.msra.mxu0 %v701
        %703 = vmatprep.subr.mxu0 0.0
        %v704 = vand.u32 %v315, 4294901760
        %v705 = vsub.f32 %v315, %v704
        %v706 = vand.u32 %v705, 4294901760
        %707 = vmatpush1.xpose.msra.mxu0 %v706
        %708 = vmatprep.subr.mxu0 0.0
        %v709 = vand.u32 %v318, 4294901760
        %v710 = vsub.f32 %v318, %v709
        %v711 = vand.u32 %v710, 4294901760
        %712 = vmatpush1.xpose.msra.mxu0 %v711
        %713 = vmatprep.subr.mxu0 0.0
        %v714 = vand.u32 %v321, 4294901760
        %v715 = vsub.f32 %v321, %v714
        %v716 = vand.u32 %v715, 4294901760
        %717 = vmatpush1.xpose.msra.mxu0 %v716
        %718 = vmatprep.subr.mxu0 0.0
        %v719 = vand.u32 %v324, 4294901760
        %v720 = vsub.f32 %v324, %v719
        %v721 = vand.u32 %v720, 4294901760
        %722 = vmatpush1.xpose.msra.mxu0 %v721
        %723 = vmatprep.subr.mxu0 0.0
        %v724 = vand.u32 %v327, 4294901760
        %v725 = vsub.f32 %v327, %v724
        %v726 = vand.u32 %v725, 4294901760
        %727 = vmatpush1.xpose.msra.mxu0 %v726
        %728 = vmatprep.subr.mxu0 0.0
        %v729 = vand.u32 %v330, 4294901760
        %v730 = vsub.f32 %v330, %v729
        %v731 = vand.u32 %v730, 4294901760
        %732 = vmatpush1.xpose.msra.mxu0 %v731
        %733 = vmatprep.subr.mxu0 0.0
        %v734 = vand.u32 %v333, 4294901760
        %v735 = vsub.f32 %v333, %v734
        %v736 = vand.u32 %v735, 4294901760
        %737 = vmatpush1.xpose.msra.mxu0 %v736
        %738 = vmatprep.subr.mxu0 0.0
        %739 = vmatpush1.xpose.msra.mxu0 0.0
        %740 = vmatprep.subr.mxu0 0.0
        %741 = vmatpush1.xpose.msra.mxu0 0.0
        %742 = vmatprep.subr.mxu0 0.0
        %743 = vmatpush1.xpose.msra.mxu0 0.0
        %744 = vmatprep.subr.mxu0 0.0
        %745 = vmatpush1.xpose.msra.mxu0 0.0
        %746 = vmatprep.subr.mxu0 0.0
        %747 = vmatpush1.xpose.msra.mxu0 0.0
        %748 = vmatprep.subr.mxu0 0.0
        %749 = vmatpush1.xpose.msra.mxu0 0.0
        %750 = vmatprep.subr.mxu0 0.0
        %751 = vmatpush1.xpose.msra.mxu0 0.0
        %752 = vmatprep.subr.mxu0 0.0
        %753 = vmatpush1.xpose.msra.mxu0 0.0
        %754 = vmatprep.subr.mxu0 0.0
        %755 = vmatpush1.xpose.msra.mxu0 0.0
        %756 = vmatprep.subr.mxu0 0.0
        %757 = vmatpush1.xpose.msra.mxu0 0.0
        %758 = vmatprep.subr.mxu0 0.0
        %759 = vmatpush1.xpose.msra.mxu0 0.0
        %760 = vmatprep.subr.mxu0 0.0
        %761 = vmatpush1.xpose.msra.mxu0 0.0
        %762 = vmatprep.subr.mxu0 0.0
        %763 = vmatpush1.xpose.msra.mxu0 0.0
        %764 = vmatprep.subr.mxu0 0.0
        %765 = vmatpush1.xpose.msra.mxu0 0.0
        %766 = vmatprep.subr.mxu0 0.0
        %767 = vmatpush1.xpose.msra.mxu0 0.0
        %768 = vmatprep.subr.mxu0 0.0
        %769 = vmatpush1.xpose.msra.mxu0 0.0
        %770 = vmatprep.subr.mxu0 0.0
        %771 = vmatpush1.xpose.msra.mxu0 0.0
        %772 = vmatprep.subr.mxu0 0.0
        %773 = vmatpush1.xpose.msra.mxu0 0.0
        %774 = vmatprep.subr.mxu0 0.0
        %775 = vmatpush1.xpose.msra.mxu0 0.0
        %776 = vmatprep.subr.mxu0 0.0
        %777 = vmatpush1.xpose.msra.mxu0 0.0
        %778 = vmatprep.subr.mxu0 0.0
        %779 = vmatpush1.xpose.msra.mxu0 0.0
        %780 = vmatprep.subr.mxu0 0.0
        %781 = vmatpush1.xpose.msra.mxu0 0.0
        %782 = vmatprep.subr.mxu0 0.0
        %783 = vmatpush1.xpose.msra.mxu0 0.0
        %784 = vmatprep.subr.mxu0 0.0
        %785 = vmatpush1.xpose.msra.mxu0 0.0
        %786 = vmatprep.mubr.f32.mxu0 0.0
        %v787 = vand.u32 %v309, 4294901760
        %788 = vmatmul.mubr.f32.gmra.mrb[0].mxu0 %v787
        %v789 = vpop.f32.mrb[0].mxu0
        %v790 = vadd.f32 %v695, %v789
        %v791 = vpop.f32.mrb[0].mxu0
        %792 = vdwg.mxu0
        %793 = vmatprep.subr.mxu0 0.0
        %v794 = vand.u32 %v312, 4294901760
        %795 = vmatpush1.xpose.msra.mxu0 %v794
        %796 = vmatprep.subr.mxu0 0.0
        %v797 = vand.u32 %v315, 4294901760
        %798 = vmatpush1.xpose.msra.mxu0 %v797
        %799 = vmatprep.subr.mxu0 0.0
        %v800 = vand.u32 %v318, 4294901760
        %801 = vmatpush1.xpose.msra.mxu0 %v800
        %802 = vmatprep.subr.mxu0 0.0
        %v803 = vand.u32 %v321, 4294901760
        %804 = vmatpush1.xpose.msra.mxu0 %v803
        %805 = vmatprep.subr.mxu0 0.0
        %v806 = vand.u32 %v324, 4294901760
        %807 = vmatpush1.xpose.msra.mxu0 %v806
        %808 = vmatprep.subr.mxu0 0.0
        %v809 = vand.u32 %v327, 4294901760
        %810 = vmatpush1.xpose.msra.mxu0 %v809
        %811 = vmatprep.subr.mxu0 0.0
        %v812 = vand.u32 %v330, 4294901760
        %813 = vmatpush1.xpose.msra.mxu0 %v812
        %814 = vmatprep.subr.mxu0 0.0
        %v815 = vand.u32 %v333, 4294901760
        %816 = vmatpush1.xpose.msra.mxu0 %v815
        %817 = vmatprep.subr.mxu0 0.0
        %818 = vmatpush1.xpose.msra.mxu0 0.0
        %819 = vmatprep.subr.mxu0 0.0
        %820 = vmatpush1.xpose.msra.mxu0 0.0
        %821 = vmatprep.subr.mxu0 0.0
        %822 = vmatpush1.xpose.msra.mxu0 0.0
        %823 = vmatprep.subr.mxu0 0.0
        %824 = vmatpush1.xpose.msra.mxu0 0.0
        %825 = vmatprep.subr.mxu0 0.0
        %826 = vmatpush1.xpose.msra.mxu0 0.0
        %827 = vmatprep.subr.mxu0 0.0
        %828 = vmatpush1.xpose.msra.mxu0 0.0
        %829 = vmatprep.subr.mxu0 0.0
        %830 = vmatpush1.xpose.msra.mxu0 0.0
        %831 = vmatprep.subr.mxu0 0.0
        %832 = vmatpush1.xpose.msra.mxu0 0.0
        %833 = vmatprep.subr.mxu0 0.0
        %834 = vmatpush1.xpose.msra.mxu0 0.0
        %835 = vmatprep.subr.mxu0 0.0
        %836 = vmatpush1.xpose.msra.mxu0 0.0
        %837 = vmatprep.subr.mxu0 0.0
        %838 = vmatpush1.xpose.msra.mxu0 0.0
        %839 = vmatprep.subr.mxu0 0.0
        %840 = vmatpush1.xpose.msra.mxu0 0.0
        %841 = vmatprep.subr.mxu0 0.0
        %842 = vmatpush1.xpose.msra.mxu0 0.0
        %843 = vmatprep.subr.mxu0 0.0
        %844 = vmatpush1.xpose.msra.mxu0 0.0
        %845 = vmatprep.subr.mxu0 0.0
        %846 = vmatpush1.xpose.msra.mxu0 0.0
        %847 = vmatprep.subr.mxu0 0.0
        %848 = vmatpush1.xpose.msra.mxu0 0.0
        %849 = vmatprep.subr.mxu0 0.0
        %850 = vmatpush1.xpose.msra.mxu0 0.0
        %851 = vmatprep.subr.mxu0 0.0
        %852 = vmatpush1.xpose.msra.mxu0 0.0
        %853 = vmatprep.subr.mxu0 0.0
        %854 = vmatpush1.xpose.msra.mxu0 0.0
        %855 = vmatprep.subr.mxu0 0.0
        %856 = vmatpush1.xpose.msra.mxu0 0.0
        %857 = vmatprep.subr.mxu0 0.0
        %858 = vmatpush1.xpose.msra.mxu0 0.0
        %859 = vmatprep.subr.mxu0 0.0
        %860 = vmatpush1.xpose.msra.mxu0 0.0
        %861 = vmatprep.subr.mxu0 0.0
        %862 = vmatpush1.xpose.msra.mxu0 0.0
        %863 = vmatprep.subr.mxu0 0.0
        %864 = vmatpush1.xpose.msra.mxu0 0.0
        %865 = vmatprep.mubr.f32.mxu0 0.0
        %v866 = vand.u32 %v309, 4294901760
        %867 = vmatmul.mubr.f32.gmra.mrb[0].mxu0 %v866
        %v868 = vpop.f32.mrb[0].mxu0
        %v869 = vadd.f32 %v790, %v868
        %v870 = vpop.f32.mrb[0].mxu0
        %871 = vdwg.mxu0
        %v872 = vmax.f32 %v869, 0.0
        %v873 = vld [vmem:[#allocation2] sm:$0xff]
        %v874 = vld [vmem:[%s284] sm:$0xff]
        %v875 = vld [vmem:[%s284 + $0x8] sm:$0xff]
        %v876 = vld [vmem:[%s284 + $0x10] sm:$0xff]
        %v877 = vld [vmem:[%s284 + $0x18] sm:$0xff]
        %vm878 = vcmask 523264
        %v880 = vsel %vm878, %v872, 0
        %v883 = vsel %vm878, %v874, 0
        %v886 = vsel %vm878, %v875, 0
        %v889 = vsel %vm878, %v876, 0
        %v892 = vsel %vm878, %v877, 0
        %894 = vmatprep.subr.mxu0 0.0
        %v895 = vand.u32 %v883, 4294901760
        %896 = vmatpush1.xpose.msra.mxu0 %v895
        %897 = vmatprep.subr.mxu0 0.0
        %v898 = vand.u32 %v886, 4294901760
        %899 = vmatpush1.xpose.msra.mxu0 %v898
        %900 = vmatprep.subr.mxu0 0.0
        %v901 = vand.u32 %v889, 4294901760
        %902 = vmatpush1.xpose.msra.mxu0 %v901
        %903 = vmatprep.subr.mxu0 0.0
        %v904 = vand.u32 %v892, 4294901760
        %905 = vmatpush1.xpose.msra.mxu0 %v904
        %906 = vmatprep.subr.mxu0 0.0
        %907 = vmatpush1.xpose.msra.mxu0 0.0
        %908 = vmatprep.subr.mxu0 0.0
        %909 = vmatpush1.xpose.msra.mxu0 0.0
        %910 = vmatprep.subr.mxu0 0.0
        %911 = vmatpush1.xpose.msra.mxu0 0.0
        %912 = vmatprep.subr.mxu0 0.0
        %913 = vmatpush1.xpose.msra.mxu0 0.0
        %914 = vmatprep.subr.mxu0 0.0
        %915 = vmatpush1.xpose.msra.mxu0 0.0
        %916 = vmatprep.subr.mxu0 0.0
        %917 = vmatpush1.xpose.msra.mxu0 0.0
        %918 = vmatprep.subr.mxu0 0.0
        %919 = vmatpush1.xpose.msra.mxu0 0.0
        %920 = vmatprep.subr.mxu0 0.0
        %921 = vmatpush1.xpose.msra.mxu0 0.0
        %922 = vmatprep.subr.mxu0 0.0
        %923 = vmatpush1.xpose.msra.mxu0 0.0
        %924 = vmatprep.subr.mxu0 0.0
        %925 = vmatpush1.xpose.msra.mxu0 0.0
        %926 = vmatprep.subr.mxu0 0.0
        %927 = vmatpush1.xpose.msra.mxu0 0.0
        %928 = vmatprep.subr.mxu0 0.0
        %929 = vmatpush1.xpose.msra.mxu0 0.0
        %930 = vmatprep.subr.mxu0 0.0
        %931 = vmatpush1.xpose.msra.mxu0 0.0
        %932 = vmatprep.subr.mxu0 0.0
        %933 = vmatpush1.xpose.msra.mxu0 0.0
        %934 = vmatprep.subr.mxu0 0.0
        %935 = vmatpush1.xpose.msra.mxu0 0.0
        %936 = vmatprep.subr.mxu0 0.0
        %937 = vmatpush1.xpose.msra.mxu0 0.0
        %938 = vmatprep.subr.mxu0 0.0
        %939 = vmatpush1.xpose.msra.mxu0 0.0
        %940 = vmatprep.subr.mxu0 0.0
        %941 = vmatpush1.xpose.msra.mxu0 0.0
        %942 = vmatprep.subr.mxu0 0.0
        %943 = vmatpush1.xpose.msra.mxu0 0.0
        %944 = vmatprep.subr.mxu0 0.0
        %945 = vmatpush1.xpose.msra.mxu0 0.0
        %946 = vmatprep.subr.mxu0 0.0
        %947 = vmatpush1.xpose.msra.mxu0 0.0
        %948 = vmatprep.subr.mxu0 0.0
        %949 = vmatpush1.xpose.msra.mxu0 0.0
        %950 = vmatprep.subr.mxu0 0.0
        %951 = vmatpush1.xpose.msra.mxu0 0.0
        %952 = vmatprep.subr.mxu0 0.0
        %953 = vmatpush1.xpose.msra.mxu0 0.0
        %954 = vmatprep.subr.mxu0 0.0
        %955 = vmatpush1.xpose.msra.mxu0 0.0
        %956 = vmatprep.subr.mxu0 0.0
        %957 = vmatpush1.xpose.msra.mxu0 0.0
        %958 = vmatprep.subr.mxu0 0.0
        %959 = vmatpush1.xpose.msra.mxu0 0.0
        %960 = vmatprep.subr.mxu0 0.0
        %961 = vmatpush1.xpose.msra.mxu0 0.0
        %962 = vmatprep.mubr.f32.mxu0 0.0
        %v963 = vand.u32 %v880, 4294901760
        %v964 = vsub.f32 %v880, %v963
        %v965 = vand.u32 %v964, 4294901760
        %v966 = vsub.f32 %v964, %v965
        %v967 = vand.u32 %v966, 4294901760
        %968 = vmatmul.mubr.f32.gmra.mrb[0].mxu0 %v967
        %v969 = vpop.f32.mrb[0].mxu0
        %v970 = vadd.f32 0.0, %v969
        %v971 = vpop.f32.mrb[0].mxu0
        %972 = vdwg.mxu0
        %973 = vmatprep.subr.mxu0 0.0
        %v974 = vand.u32 %v883, 4294901760
        %v975 = vsub.f32 %v883, %v974
        %v976 = vand.u32 %v975, 4294901760
        %v977 = vsub.f32 %v975, %v976
        %v978 = vand.u32 %v977, 4294901760
        %979 = vmatpush1.xpose.msra.mxu0 %v978
        %980 = vmatprep.subr.mxu0 0.0
        %v981 = vand.u32 %v886, 4294901760
        %v982 = vsub.f32 %v886, %v981
        %v983 = vand.u32 %v982, 4294901760
        %v984 = vsub.f32 %v982, %v983
        %v985 = vand.u32 %v984, 4294901760
        %986 = vmatpush1.xpose.msra.mxu0 %v985
        %987 = vmatprep.subr.mxu0 0.0
        %v988 = vand.u32 %v889, 4294901760
        %v989 = vsub.f32 %v889, %v988
        %v990 = vand.u32 %v989, 4294901760
        %v991 = vsub.f32 %v989, %v990
        %v992 = vand.u32 %v991, 4294901760
        %993 = vmatpush1.xpose.msra.mxu0 %v992
        %994 = vmatprep.subr.mxu0 0.0
        %v995 = vand.u32 %v892, 4294901760
        %v996 = vsub.f32 %v892, %v995
        %v997 = vand.u32 %v996, 4294901760
        %v998 = vsub.f32 %v996, %v997
        %v999 = vand.u32 %v998, 4294901760
        %1000 = vmatpush1.xpose.msra.mxu0 %v999
        %1001 = vmatprep.subr.mxu0 0.0
        %1002 = vmatpush1.xpose.msra.mxu0 0.0
        %1003 = vmatprep.subr.mxu0 0.0
        %1004 = vmatpush1.xpose.msra.mxu0 0.0
        %1005 = vmatprep.subr.mxu0 0.0
        %1006 = vmatpush1.xpose.msra.mxu0 0.0
        %1007 = vmatprep.subr.mxu0 0.0
        %1008 = vmatpush1.xpose.msra.mxu0 0.0
        %1009 = vmatprep.subr.mxu0 0.0
        %1010 = vmatpush1.xpose.msra.mxu0 0.0
        %1011 = vmatprep.subr.mxu0 0.0
        %1012 = vmatpush1.xpose.msra.mxu0 0.0
        %1013 = vmatprep.subr.mxu0 0.0
        %1014 = vmatpush1.xpose.msra.mxu0 0.0
        %1015 = vmatprep.subr.mxu0 0.0
        %1016 = vmatpush1.xpose.msra.mxu0 0.0
        %1017 = vmatprep.subr.mxu0 0.0
        %1018 = vmatpush1.xpose.msra.mxu0 0.0
        %1019 = vmatprep.subr.mxu0 0.0
        %1020 = vmatpush1.xpose.msra.mxu0 0.0
        %1021 = vmatprep.subr.mxu0 0.0
        %1022 = vmatpush1.xpose.msra.mxu0 0.0
        %1023 = vmatprep.subr.mxu0 0.0
        %1024 = vmatpush1.xpose.msra.mxu0 0.0
        %1025 = vmatprep.subr.mxu0 0.0
        %1026 = vmatpush1.xpose.msra.mxu0 0.0
        %1027 = vmatprep.subr.mxu0 0.0
        %1028 = vmatpush1.xpose.msra.mxu0 0.0
        %1029 = vmatprep.subr.mxu0 0.0
        %1030 = vmatpush1.xpose.msra.mxu0 0.0
        %1031 = vmatprep.subr.mxu0 0.0
        %1032 = vmatpush1.xpose.msra.mxu0 0.0
        %1033 = vmatprep.subr.mxu0 0.0
        %1034 = vmatpush1.xpose.msra.mxu0 0.0
        %1035 = vmatprep.subr.mxu0 0.0
        %1036 = vmatpush1.xpose.msra.mxu0 0.0
        %1037 = vmatprep.subr.mxu0 0.0
        %1038 = vmatpush1.xpose.msra.mxu0 0.0
        %1039 = vmatprep.subr.mxu0 0.0
        %1040 = vmatpush1.xpose.msra.mxu0 0.0
        %1041 = vmatprep.subr.mxu0 0.0
        %1042 = vmatpush1.xpose.msra.mxu0 0.0
        %1043 = vmatprep.subr.mxu0 0.0
        %1044 = vmatpush1.xpose.msra.mxu0 0.0
        %1045 = vmatprep.subr.mxu0 0.0
        %1046 = vmatpush1.xpose.msra.mxu0 0.0
        %1047 = vmatprep.subr.mxu0 0.0
        %1048 = vmatpush1.xpose.msra.mxu0 0.0
        %1049 = vmatprep.subr.mxu0 0.0
        %1050 = vmatpush1.xpose.msra.mxu0 0.0
        %1051 = vmatprep.subr.mxu0 0.0
        %1052 = vmatpush1.xpose.msra.mxu0 0.0
        %1053 = vmatprep.subr.mxu0 0.0
        %1054 = vmatpush1.xpose.msra.mxu0 0.0
        %1055 = vmatprep.subr.mxu0 0.0
        %1056 = vmatpush1.xpose.msra.mxu0 0.0
        %1057 = vmatprep.mubr.f32.mxu0 0.0
        %v1058 = vand.u32 %v880, 4294901760
        %1059 = vmatmul.mubr.f32.gmra.mrb[0].mxu0 %v1058
        %v1060 = vpop.f32.mrb[0].mxu0
        %v1061 = vadd.f32 %v970, %v1060
        %v1062 = vpop.f32.mrb[0].mxu0
        %1063 = vdwg.mxu0
        %1064 = vmatprep.subr.mxu0 0.0
        %v1065 = vand.u32 %v883, 4294901760
        %v1066 = vsub.f32 %v883, %v1065
        %1067 = vmatpush1.xpose.msra.mxu0 %v1066
        %1068 = vmatprep.subr.mxu0 0.0
        %v1069 = vand.u32 %v886, 4294901760
        %v1070 = vsub.f32 %v886, %v1069
        %1071 = vmatpush1.xpose.msra.mxu0 %v1070
        %1072 = vmatprep.subr.mxu0 0.0
        %v1073 = vand.u32 %v889, 4294901760
        %v1074 = vsub.f32 %v889, %v1073
        %1075 = vmatpush1.xpose.msra.mxu0 %v1074
        %1076 = vmatprep.subr.mxu0 0.0
        %v1077 = vand.u32 %v892, 4294901760
        %v1078 = vsub.f32 %v892, %v1077
        %1079 = vmatpush1.xpose.msra.mxu0 %v1078
        %1080 = vmatprep.subr.mxu0 0.0
        %1081 = vmatpush1.xpose.msra.mxu0 0.0
        %1082 = vmatprep.subr.mxu0 0.0
        %1083 = vmatpush1.xpose.msra.mxu0 0.0
        %1084 = vmatprep.subr.mxu0 0.0
        %1085 = vmatpush1.xpose.msra.mxu0 0.0
        %1086 = vmatprep.subr.mxu0 0.0
        %1087 = vmatpush1.xpose.msra.mxu0 0.0
        %1088 = vmatprep.subr.mxu0 0.0
        %1089 = vmatpush1.xpose.msra.mxu0 0.0
        %1090 = vmatprep.subr.mxu0 0.0
        %1091 = vmatpush1.xpose.msra.mxu0 0.0
        %1092 = vmatprep.subr.mxu0 0.0
        %1093 = vmatpush1.xpose.msra.mxu0 0.0
        %1094 = vmatprep.subr.mxu0 0.0
        %1095 = vmatpush1.xpose.msra.mxu0 0.0
        %1096 = vmatprep.subr.mxu0 0.0
        %1097 = vmatpush1.xpose.msra.mxu0 0.0
        %1098 = vmatprep.subr.mxu0 0.0
        %1099 = vmatpush1.xpose.msra.mxu0 0.0
        %1100 = vmatprep.subr.mxu0 0.0
        %1101 = vmatpush1.xpose.msra.mxu0 0.0
        %1102 = vmatprep.subr.mxu0 0.0
        %1103 = vmatpush1.xpose.msra.mxu0 0.0
        %1104 = vmatprep.subr.mxu0 0.0
        %1105 = vmatpush1.xpose.msra.mxu0 0.0
        %1106 = vmatprep.subr.mxu0 0.0
        %1107 = vmatpush1.xpose.msra.mxu0 0.0
        %1108 = vmatprep.subr.mxu0 0.0
        %1109 = vmatpush1.xpose.msra.mxu0 0.0
        %1110 = vmatprep.subr.mxu0 0.0
        %1111 = vmatpush1.xpose.msra.mxu0 0.0
        %1112 = vmatprep.subr.mxu0 0.0
        %1113 = vmatpush1.xpose.msra.mxu0 0.0
        %1114 = vmatprep.subr.mxu0 0.0
        %1115 = vmatpush1.xpose.msra.mxu0 0.0
        %1116 = vmatprep.subr.mxu0 0.0
        %1117 = vmatpush1.xpose.msra.mxu0 0.0
        %1118 = vmatprep.subr.mxu0 0.0
        %1119 = vmatpush1.xpose.msra.mxu0 0.0
        %1120 = vmatprep.subr.mxu0 0.0
        %1121 = vmatpush1.xpose.msra.mxu0 0.0
        %1122 = vmatprep.subr.mxu0 0.0
        %1123 = vmatpush1.xpose.msra.mxu0 0.0
        %1124 = vmatprep.subr.mxu0 0.0
        %1125 = vmatpush1.xpose.msra.mxu0 0.0
        %1126 = vmatprep.subr.mxu0 0.0
        %1127 = vmatpush1.xpose.msra.mxu0 0.0
        %1128 = vmatprep.subr.mxu0 0.0
        %1129 = vmatpush1.xpose.msra.mxu0 0.0
        %1130 = vmatprep.subr.mxu0 0.0
        %1131 = vmatpush1.xpose.msra.mxu0 0.0
        %1132 = vmatprep.subr.mxu0 0.0
        %1133 = vmatpush1.xpose.msra.mxu0 0.0
        %1134 = vmatprep.subr.mxu0 0.0
        %1135 = vmatpush1.xpose.msra.mxu0 0.0
        %1136 = vmatprep.mubr.f32.mxu0 0.0
        %v1137 = vand.u32 %v880, 4294901760
        %v1138 = vsub.f32 %v880, %v1137
        %1139 = vmatmul.mubr.f32.gmra.mrb[0].mxu0 %v1138
        %v1140 = vpop.f32.mrb[0].mxu0
        %v1141 = vadd.f32 %v1061, %v1140
        %v1142 = vpop.f32.mrb[0].mxu0
        %1143 = vdwg.mxu0
        %1144 = vmatprep.subr.mxu0 0.0
        %v1145 = vand.u32 %v883, 4294901760
        %1146 = vmatpush1.xpose.msra.mxu0 %v1145
        %1147 = vmatprep.subr.mxu0 0.0
        %v1148 = vand.u32 %v886, 4294901760
        %1149 = vmatpush1.xpose.msra.mxu0 %v1148
        %1150 = vmatprep.subr.mxu0 0.0
        %v1151 = vand.u32 %v889, 4294901760
        %1152 = vmatpush1.xpose.msra.mxu0 %v1151
        %1153 = vmatprep.subr.mxu0 0.0
        %v1154 = vand.u32 %v892, 4294901760
        %1155 = vmatpush1.xpose.msra.mxu0 %v1154
        %1156 = vmatprep.subr.mxu0 0.0
        %1157 = vmatpush1.xpose.msra.mxu0 0.0
        %1158 = vmatprep.subr.mxu0 0.0
        %1159 = vmatpush1.xpose.msra.mxu0 0.0
        %1160 = vmatprep.subr.mxu0 0.0
        %1161 = vmatpush1.xpose.msra.mxu0 0.0
        %1162 = vmatprep.subr.mxu0 0.0
        %1163 = vmatpush1.xpose.msra.mxu0 0.0
        %1164 = vmatprep.subr.mxu0 0.0
        %1165 = vmatpush1.xpose.msra.mxu0 0.0
        %1166 = vmatprep.subr.mxu0 0.0
        %1167 = vmatpush1.xpose.msra.mxu0 0.0
        %1168 = vmatprep.subr.mxu0 0.0
        %1169 = vmatpush1.xpose.msra.mxu0 0.0
        %1170 = vmatprep.subr.mxu0 0.0
        %1171 = vmatpush1.xpose.msra.mxu0 0.0
        %1172 = vmatprep.subr.mxu0 0.0
        %1173 = vmatpush1.xpose.msra.mxu0 0.0
        %1174 = vmatprep.subr.mxu0 0.0
        %1175 = vmatpush1.xpose.msra.mxu0 0.0
        %1176 = vmatprep.subr.mxu0 0.0
        %1177 = vmatpush1.xpose.msra.mxu0 0.0
        %1178 = vmatprep.subr.mxu0 0.0
        %1179 = vmatpush1.xpose.msra.mxu0 0.0
        %1180 = vmatprep.subr.mxu0 0.0
        %1181 = vmatpush1.xpose.msra.mxu0 0.0
        %1182 = vmatprep.subr.mxu0 0.0
        %1183 = vmatpush1.xpose.msra.mxu0 0.0
        %1184 = vmatprep.subr.mxu0 0.0
        %1185 = vmatpush1.xpose.msra.mxu0 0.0
        %1186 = vmatprep.subr.mxu0 0.0
        %1187 = vmatpush1.xpose.msra.mxu0 0.0
        %1188 = vmatprep.subr.mxu0 0.0
        %1189 = vmatpush1.xpose.msra.mxu0 0.0
        %1190 = vmatprep.subr.mxu0 0.0
        %1191 = vmatpush1.xpose.msra.mxu0 0.0
        %1192 = vmatprep.subr.mxu0 0.0
        %1193 = vmatpush1.xpose.msra.mxu0 0.0
        %1194 = vmatprep.subr.mxu0 0.0
        %1195 = vmatpush1.xpose.msra.mxu0 0.0
        %1196 = vmatprep.subr.mxu0 0.0
        %1197 = vmatpush1.xpose.msra.mxu0 0.0
        %1198 = vmatprep.subr.mxu0 0.0
        %1199 = vmatpush1.xpose.msra.mxu0 0.0
        %1200 = vmatprep.subr.mxu0 0.0
        %1201 = vmatpush1.xpose.msra.mxu0 0.0
        %1202 = vmatprep.subr.mxu0 0.0
        %1203 = vmatpush1.xpose.msra.mxu0 0.0
        %1204 = vmatprep.subr.mxu0 0.0
        %1205 = vmatpush1.xpose.msra.mxu0 0.0
        %1206 = vmatprep.subr.mxu0 0.0
        %1207 = vmatpush1.xpose.msra.mxu0 0.0
        %1208 = vmatprep.subr.mxu0 0.0
        %1209 = vmatpush1.xpose.msra.mxu0 0.0
        %1210 = vmatprep.subr.mxu0 0.0
        %1211 = vmatpush1.xpose.msra.mxu0 0.0
        %1212 = vmatprep.mubr.f32.mxu0 0.0
        %v1213 = vand.u32 %v880, 4294901760
        %v1214 = vsub.f32 %v880, %v1213
        %v1215 = vand.u32 %v1214, 4294901760
        %1216 = vmatmul.mubr.f32.gmra.mrb[0].mxu0 %v1215
        %v1217 = vpop.f32.mrb[0].mxu0
        %v1218 = vadd.f32 %v1141, %v1217
        %v1219 = vpop.f32.mrb[0].mxu0
        %1220 = vdwg.mxu0
        %1221 = vmatprep.subr.mxu0 0.0
        %v1222 = vand.u32 %v883, 4294901760
        %v1223 = vsub.f32 %v883, %v1222
        %v1224 = vand.u32 %v1223, 4294901760
        %1225 = vmatpush1.xpose.msra.mxu0 %v1224
        %1226 = vmatprep.subr.mxu0 0.0
        %v1227 = vand.u32 %v886, 4294901760
        %v1228 = vsub.f32 %v886, %v1227
        %v1229 = vand.u32 %v1228, 4294901760
        %1230 = vmatpush1.xpose.msra.mxu0 %v1229
        %1231 = vmatprep.subr.mxu0 0.0
        %v1232 = vand.u32 %v889, 4294901760
        %v1233 = vsub.f32 %v889, %v1232
        %v1234 = vand.u32 %v1233, 4294901760
        %1235 = vmatpush1.xpose.msra.mxu0 %v1234
        %1236 = vmatprep.subr.mxu0 0.0
        %v1237 = vand.u32 %v892, 4294901760
        %v1238 = vsub.f32 %v892, %v1237
        %v1239 = vand.u32 %v1238, 4294901760
        %1240 = vmatpush1.xpose.msra.mxu0 %v1239
        %1241 = vmatprep.subr.mxu0 0.0
        %1242 = vmatpush1.xpose.msra.mxu0 0.0
        %1243 = vmatprep.subr.mxu0 0.0
        %1244 = vmatpush1.xpose.msra.mxu0 0.0
        %1245 = vmatprep.subr.mxu0 0.0
        %1246 = vmatpush1.xpose.msra.mxu0 0.0
        %1247 = vmatprep.subr.mxu0 0.0
        %1248 = vmatpush1.xpose.msra.mxu0 0.0
        %1249 = vmatprep.subr.mxu0 0.0
        %1250 = vmatpush1.xpose.msra.mxu0 0.0
        %1251 = vmatprep.subr.mxu0 0.0
        %1252 = vmatpush1.xpose.msra.mxu0 0.0
        %1253 = vmatprep.subr.mxu0 0.0
        %1254 = vmatpush1.xpose.msra.mxu0 0.0
        %1255 = vmatprep.subr.mxu0 0.0
        %1256 = vmatpush1.xpose.msra.mxu0 0.0
        %1257 = vmatprep.subr.mxu0 0.0
        %1258 = vmatpush1.xpose.msra.mxu0 0.0
        %1259 = vmatprep.subr.mxu0 0.0
        %1260 = vmatpush1.xpose.msra.mxu0 0.0
        %1261 = vmatprep.subr.mxu0 0.0
        %1262 = vmatpush1.xpose.msra.mxu0 0.0
        %1263 = vmatprep.subr.mxu0 0.0
        %1264 = vmatpush1.xpose.msra.mxu0 0.0
        %1265 = vmatprep.subr.mxu0 0.0
        %1266 = vmatpush1.xpose.msra.mxu0 0.0
        %1267 = vmatprep.subr.mxu0 0.0
        %1268 = vmatpush1.xpose.msra.mxu0 0.0
        %1269 = vmatprep.subr.mxu0 0.0
        %1270 = vmatpush1.xpose.msra.mxu0 0.0
        %1271 = vmatprep.subr.mxu0 0.0
        %1272 = vmatpush1.xpose.msra.mxu0 0.0
        %1273 = vmatprep.subr.mxu0 0.0
        %1274 = vmatpush1.xpose.msra.mxu0 0.0
        %1275 = vmatprep.subr.mxu0 0.0
        %1276 = vmatpush1.xpose.msra.mxu0 0.0
        %1277 = vmatprep.subr.mxu0 0.0
        %1278 = vmatpush1.xpose.msra.mxu0 0.0
        %1279 = vmatprep.subr.mxu0 0.0
        %1280 = vmatpush1.xpose.msra.mxu0 0.0
        %1281 = vmatprep.subr.mxu0 0.0
        %1282 = vmatpush1.xpose.msra.mxu0 0.0
        %1283 = vmatprep.subr.mxu0 0.0
        %1284 = vmatpush1.xpose.msra.mxu0 0.0
        %1285 = vmatprep.subr.mxu0 0.0
        %1286 = vmatpush1.xpose.msra.mxu0 0.0
        %1287 = vmatprep.subr.mxu0 0.0
        %1288 = vmatpush1.xpose.msra.mxu0 0.0
        %1289 = vmatprep.subr.mxu0 0.0
        %1290 = vmatpush1.xpose.msra.mxu0 0.0
        %1291 = vmatprep.subr.mxu0 0.0
        %1292 = vmatpush1.xpose.msra.mxu0 0.0
        %1293 = vmatprep.subr.mxu0 0.0
        %1294 = vmatpush1.xpose.msra.mxu0 0.0
        %1295 = vmatprep.subr.mxu0 0.0
        %1296 = vmatpush1.xpose.msra.mxu0 0.0
        %1297 = vmatprep.mubr.f32.mxu0 0.0
        %v1298 = vand.u32 %v880, 4294901760
        %1299 = vmatmul.mubr.f32.gmra.mrb[0].mxu0 %v1298
        %v1300 = vpop.f32.mrb[0].mxu0
        %v1301 = vadd.f32 %v1218, %v1300
        %v1302 = vpop.f32.mrb[0].mxu0
        %1303 = vdwg.mxu0
        %1304 = vmatprep.subr.mxu0 0.0
        %v1305 = vand.u32 %v883, 4294901760
        %1306 = vmatpush1.xpose.msra.mxu0 %v1305
        %1307 = vmatprep.subr.mxu0 0.0
        %v1308 = vand.u32 %v886, 4294901760
        %1309 = vmatpush1.xpose.msra.mxu0 %v1308
        %1310 = vmatprep.subr.mxu0 0.0
        %v1311 = vand.u32 %v889, 4294901760
        %1312 = vmatpush1.xpose.msra.mxu0 %v1311
        %1313 = vmatprep.subr.mxu0 0.0
        %v1314 = vand.u32 %v892, 4294901760
        %1315 = vmatpush1.xpose.msra.mxu0 %v1314
        %1316 = vmatprep.subr.mxu0 0.0
        %1317 = vmatpush1.xpose.msra.mxu0 0.0
        %1318 = vmatprep.subr.mxu0 0.0
        %1319 = vmatpush1.xpose.msra.mxu0 0.0
        %1320 = vmatprep.subr.mxu0 0.0
        %1321 = vmatpush1.xpose.msra.mxu0 0.0
        %1322 = vmatprep.subr.mxu0 0.0
        %1323 = vmatpush1.xpose.msra.mxu0 0.0
        %1324 = vmatprep.subr.mxu0 0.0
        %1325 = vmatpush1.xpose.msra.mxu0 0.0
        %1326 = vmatprep.subr.mxu0 0.0
        %1327 = vmatpush1.xpose.msra.mxu0 0.0
        %1328 = vmatprep.subr.mxu0 0.0
        %1329 = vmatpush1.xpose.msra.mxu0 0.0
        %1330 = vmatprep.subr.mxu0 0.0
        %1331 = vmatpush1.xpose.msra.mxu0 0.0
        %1332 = vmatprep.subr.mxu0 0.0
        %1333 = vmatpush1.xpose.msra.mxu0 0.0
        %1334 = vmatprep.subr.mxu0 0.0
        %1335 = vmatpush1.xpose.msra.mxu0 0.0
        %1336 = vmatprep.subr.mxu0 0.0
        %1337 = vmatpush1.xpose.msra.mxu0 0.0
        %1338 = vmatprep.subr.mxu0 0.0
        %1339 = vmatpush1.xpose.msra.mxu0 0.0
        %1340 = vmatprep.subr.mxu0 0.0
        %1341 = vmatpush1.xpose.msra.mxu0 0.0
        %1342 = vmatprep.subr.mxu0 0.0
        %1343 = vmatpush1.xpose.msra.mxu0 0.0
        %1344 = vmatprep.subr.mxu0 0.0
        %1345 = vmatpush1.xpose.msra.mxu0 0.0
        %1346 = vmatprep.subr.mxu0 0.0
        %1347 = vmatpush1.xpose.msra.mxu0 0.0
        %1348 = vmatprep.subr.mxu0 0.0
        %1349 = vmatpush1.xpose.msra.mxu0 0.0
        %1350 = vmatprep.subr.mxu0 0.0
        %1351 = vmatpush1.xpose.msra.mxu0 0.0
        %1352 = vmatprep.subr.mxu0 0.0
        %1353 = vmatpush1.xpose.msra.mxu0 0.0
        %1354 = vmatprep.subr.mxu0 0.0
        %1355 = vmatpush1.xpose.msra.mxu0 0.0
        %1356 = vmatprep.subr.mxu0 0.0
        %1357 = vmatpush1.xpose.msra.mxu0 0.0
        %1358 = vmatprep.subr.mxu0 0.0
        %1359 = vmatpush1.xpose.msra.mxu0 0.0
        %1360 = vmatprep.subr.mxu0 0.0
        %1361 = vmatpush1.xpose.msra.mxu0 0.0
        %1362 = vmatprep.subr.mxu0 0.0
        %1363 = vmatpush1.xpose.msra.mxu0 0.0
        %1364 = vmatprep.subr.mxu0 0.0
        %1365 = vmatpush1.xpose.msra.mxu0 0.0
        %1366 = vmatprep.subr.mxu0 0.0
        %1367 = vmatpush1.xpose.msra.mxu0 0.0
        %1368 = vmatprep.subr.mxu0 0.0
        %1369 = vmatpush1.xpose.msra.mxu0 0.0
        %1370 = vmatprep.subr.mxu0 0.0
        %1371 = vmatpush1.xpose.msra.mxu0 0.0
        %1372 = vmatprep.mubr.f32.mxu0 0.0
        %v1373 = vand.u32 %v880, 4294901760
        %1374 = vmatmul.mubr.f32.gmra.mrb[0].mxu0 %v1373
        %v1375 = vpop.f32.mrb[0].mxu0
        %v1376 = vadd.f32 %v1301, %v1375
        %v1377 = vpop.f32.mrb[0].mxu0
        %1378 = vdwg.mxu0
        %v1379 = vadd.f32 %v873, %v1376
        %1380 = vst.msk [vmem:[#allocation2] sm:$0xff] %vm307, %v1379
        // Predicated region
        $region45: #{tpu_custom_call.1} parent=39 // pred_check
          %p1381 = pneg %p285
        $region46: #{tpu_custom_call.1} parent=39 // pred_check_branch
          %1383 = sbr.rel (%p1381) target = $region48
        $region47: #{tpu_custom_call.1} parent=39 // pred_region
          %v1384 = vld [vmem:[#allocation2] sm:$0xff]
          %v1385 = vld [vmem:[%s4] sm:$0x1]
          %v1387 = vlaneseq
          %v1388 = vshrl.u32 %v1387, 7
          %v1389 = vsub.s32 0, %v1388
          %v1390 = vrot.slane %v1385, %v1389
          %v1392 = vadd.f32 %v1384, %v1390
          %1393 = vst.msk [vmem:[%s267] sm:$0xff] %vm307, %v1392
        $region48: #{tpu_custom_call.1} parent=39 // pred_fallthru
          _
        %s1394 = sand.u32 %s164, 1
        %s1395 = scalar_lea.sflag [#allocation4], %s1394
        %s1396 = sand.u32 %s164, 1
        %s1397 = smul.addr %s1396, 8
        %s1398 = scalar_lea.vmem [#allocation3], %s1397
        // Predicated region
        $region49: #{tpu_custom_call.1} parent=39 // pred_check
          %p1399 = pneg %p174
        $region50: #{tpu_custom_call.1} parent=39 // pred_check_branch
          %1401 = sbr.rel (%p1399) target = $region52
        $region51: #{tpu_custom_call.1} parent=39 // pred_region
          %s1403 = ssub.s32 128, 128
          %1404 = vsyncadd %s1395, %s1403
          %s1405 = smul.addr %s23, 128
          %s1406 = scalar_lea.hbm %s5, %s1405
          %s1408 = sshll.u32 %s1398, 4
          %s1409 = int_to_ptr.vmem [resolvable:$true] %s1408
          %1411 = dma.vmem_to_hbm [thread:$0]  %s1409, 128, %s1406, %s1395
        $region52: #{tpu_custom_call.1} parent=39 // pred_fallthru
          _
      $region40: #{tpu_custom_call.1} parent=5 // pred_fallthru
        _
      %p1412 = scmp.le.s32.totalorder 2, %s14
      // Predicated region
      $region53: #{tpu_custom_call.1} parent=5 // pred_check
        %p1413 = pneg %p1412
      $region54: #{tpu_custom_call.1} parent=5 // pred_check_branch
        %1415 = sbr.rel (%p1413) target = $region56
      $region55: #{tpu_custom_call.1} parent=5 // pred_region
        %s1416 = ssub.s32 %s14, 2
        // Predicated region
        $region57: #{tpu_custom_call.1} parent=55 // pred_check
          %p1417 = pneg %p180
        $region58: #{tpu_custom_call.1} parent=55 // pred_check_branch
          %1419 = sbr.rel (%p1417) target = $region60
        $region59: #{tpu_custom_call.1} parent=55 // pred_region
          %s1420 = sand.u32 %s165, 1
          %s1421 = scalar_lea.sflag [#allocation4], %s1420
          %s1422 = sand.u32 %s165, 1
          %s1423 = smul.addr %s1422, 8
          %s1424 = scalar_lea.vmem [#allocation3], %s1423
          %1425 = dma.done %s1421, 128
        $region60: #{tpu_custom_call.1} parent=55 // pred_fallthru
          _
      $region56: #{tpu_custom_call.1} parent=5 // pred_fallthru
        _
    $region6: #{tpu_custom_call.1} parent=1 // loop_footer
      %s18 = sadd.s32 1, %s14
    $region7: #{tpu_custom_call.1} parent=1 // loop_footer_branch
      %13 = sbr.rel target = $region3
    $region8: #{tpu_custom_call.1} parent=1 // loop_exit
      _
    %1426 = vsyncpa [#allocation4], 1
    %s1427 = scalar_lea.sflag [#allocation4], 1
    %1428 = vsyncpa %s1427, 1

</llo_original>
